<compile_context>
chip_gen: v7x
topology: tpu7x:2x2x1
jax: 0.10.0
libtpu: 0.0.40
codegen_flags: <defaults>
</compile_context>

<pallas_src>
import functools

import jax
import jax.numpy as jnp
import numpy as np
from jax import lax
from jax.experimental import pallas as pl
from jax.experimental.pallas import tpu as pltpu

LANE = 128
SUBLANE = 8


# ----------------------------------------------------------------------------
# Fused kernel: one batch tile per grid step, all weights resident in VMEM.
# ----------------------------------------------------------------------------
def _fused_textcnn_kernel(ids_ref, emb_ref, wconv_ref, bconv_ref,
                          w1_ref, b1_ref, w2_ref, b2_ref, out_ref,
                          *, seq_len, vocab, branches, f_pad, k_max):
    # ids_ref  : (TB, L, 1) int32   token ids for this batch tile
    # emb_ref  : (V, D)      cdt    embedding table
    # wconv_ref: (D, K_max*F_pad) cdt  tap-major conv weights, each tap group
    #                                 zero-padded to F_pad (multiple of 128) lanes
    # bconv_ref: (1, F_pad)  f32    conv biases (branch order, zero padded)
    # w1_ref   : (F_pad, H)  cdt    fc1 weight (rows zero-padded F_total -> F_pad)
    # b1_ref   : (1, H)      f32
    # w2_ref   : (H, C_pad)  cdt    fc2 weight (cols zero-padded to 128 lanes)
    # b2_ref   : (1, C_pad)  f32
    # out_ref  : (TB, C_pad) f32    lane-dense logits slab
    TB = ids_ref.shape[0]
    L = seq_len
    V = vocab
    M = TB * L
    cdt = emb_ref.dtype

    # ---- embedding gather as a one-hot matmul on the MXU --------------------
    # TODO(synk): for production vocab sizes (V >~ 1k) replace with a DMA row
    # gather (scalar-prefetched ids, embedding left in HBM); one-hot is only
    # sane at tiny V.
    ids = ids_ref[...]                                            # (TB, L, 1) i32
    iota_v = lax.broadcasted_iota(jnp.int32, (TB, L, V), 2)
    onehot = (ids == iota_v).astype(cdt).reshape(M, V)            # L % 8 == 0
    # Exact row copies -> emitting the compute dtype directly is lossless.
    x_flat = jnp.dot(onehot, emb_ref[...], preferred_element_type=cdt)   # (M, D)

    # ---- every conv tap of every branch in ONE matmul ------------------------
    z_all = jnp.dot(x_flat, wconv_ref[...],
                    preferred_element_type=jnp.float32)           # (M, K_max*F_pad) f32

    # ---- shifted adds via XLU sublane rotation --------------------------------
    # conv[b, t, f] = sum_j z_j[b, t + j, f].  Rolling the flattened (TB*L) axis
    # by -j only corrupts positions t >= L - j, which are always masked below.
    acc = z_all[:, :f_pad]
    for j in range(1, k_max):                                     # static unroll
        zj = z_all[:, j * f_pad:(j + 1) * f_pad]                  # lane-aligned slice
        acc = acc + pltpu.roll(zj, shift=M - j, axis=0)           # == jnp.roll(zj, -j)
    acc3 = acc.reshape(TB, L, f_pad) + bconv_ref[...].reshape(1, 1, f_pad)

    # ---- per-lane valid-time mask, max-over-time pool, ReLU -------------------
    lane = lax.broadcasted_iota(jnp.int32, (1, 1, f_pad), 2)
    valid_len = jnp.full((1, 1, f_pad), 1, jnp.int32)             # pad lanes -> pooled 0
    off = 0
    for (K, F) in branches:                                       # static unroll
        valid_len = jnp.where((lane >= off) & (lane < off + F), L - K + 1, valid_len)
        off += F
    t_iota = lax.broadcasted_iota(jnp.int32, (TB, L, f_pad), 1)
    conv = jnp.where(t_iota < valid_len, acc3, jnp.float32(-1e30))
    pooled = jnp.maximum(jnp.max(conv, axis=1), 0.0)              # (TB, F_pad); max∘relu == relu∘max

    # ---- fc1 + ReLU (+identity dropout) + fc2, lane-dense store ---------------
    h = jnp.dot(pooled.astype(cdt), w1_ref[...],
                preferred_element_type=jnp.float32) + b1_ref[...]
    h = jnp.maximum(h, 0.0)
    # TODO(synk): dropout (p=0.5) omitted — inference-mode identity.
    out_ref[...] = (jnp.dot(h.astype(cdt), w2_ref[...],
                            preferred_element_type=jnp.float32) + b2_ref[...])


# ----------------------------------------------------------------------------
# Wrapper helpers.
# ----------------------------------------------------------------------------
def _pick_batch_tile(batch, seq_len, requested):
    if requested is not None:
        return max(SUBLANE, int(np.ceil(requested / SUBLANE)) * SUBLANE)
    # Fill MXU rows: conv-matmul M = TB*L, aim for >= 256 (v6e/v7x MXU width),
    # cap at 64 batch rows per grid step.
    tb = int(np.ceil(256 / seq_len / SUBLANE)) * SUBLANE
    tb = int(np.clip(tb, SUBLANE, 64))
    # Keep >= 2 grid steps when the batch allows it so v7x's two TensorCores
    # both get work under dimension_semantics=("parallel",).
    while tb > SUBLANE and int(np.ceil(batch / tb)) < 2:
        tb -= SUBLANE
    return tb


def _resident_weight_spec(shape):
    """Full-array, constant-index weight block; single-buffered when supported."""
    index_map = lambda i: (0,) * len(shape)
    try:
        return pl.BlockSpec(shape, index_map,
                            pipeline_mode=pl.Buffered(buffer_count=1))
    except (AttributeError, TypeError):   # older JAX: keep default double buffering
        return pl.BlockSpec(shape, index_map)


# ----------------------------------------------------------------------------
# Forward wrapper: packs/pads weights, launches the fused kernel.
# ----------------------------------------------------------------------------
def cnn_model_forward(params, token_ids, *, batch_tile=None,
                      compute_dtype=jnp.bfloat16):
    """token_ids: (B, L) int32 -> logits (B, num_classes) f32.

    compute_dtype: MXU operand dtype. bf16 (default) is fast on all TPU gens;
    pass jnp.float32 for bit-accurate comparison against the f32 reference.
    Accumulation and elementwise math are f32 either way.
    """
    emb = params["embedding"]
    V, D = int(emb.shape[0]), int(emb.shape[1])
    B, L = int(token_ids.shape[0]), int(token_ids.shape[1])
    # TODO(synk): general L needs sequence padding + mask; demo keeps L % 8 == 0.
    assert L % SUBLANE == 0, "seq_len must be a multiple of 8 for in-kernel reshapes"

    branches = tuple((int(w.shape[0]), int(w.shape[2])) for (w, _) in params["convs"])
    k_max = max(k for (k, _) in branches)
    f_total = sum(f for (_, f) in branches)
    f_pad = int(np.ceil(f_total / LANE) * LANE)        # 128-lane aligned tap groups
    n_all = k_max * f_pad

    # --- conv weights, tap-major: column block j holds tap j of every branch
    #     (zero columns for branches with K <= j), zero-padded to f_pad lanes.
    tap_blocks = []
    for j in range(k_max):
        cols = []
        for (w, _) in params["convs"]:
            K, _, F = w.shape
            cols.append(w[j] if j < K else jnp.zeros((D, F), w.dtype))
        tap = jnp.concatenate(cols, axis=1)
        if f_pad > f_total:
            tap = jnp.concatenate(
                [tap, jnp.zeros((D, f_pad - f_total), tap.dtype)], axis=1)
        tap_blocks.append(tap)
    wconv = jnp.concatenate(tap_blocks, axis=1)                         # (D, n_all)

    bconv = jnp.concatenate([b for (_, b) in params["convs"]], axis=1)  # (1, F_total)
    if f_pad > f_total:
        bconv = jnp.concatenate(
            [bconv, jnp.zeros((1, f_pad - f_total), bconv.dtype)], axis=1)

    # --- fc1: pad contraction rows F_total -> f_pad (pad lanes of `pooled` are 0).
    w1 = params["fc1_w"]
    H = int(w1.shape[1])
    if f_pad > f_total:
        w1 = jnp.concatenate([w1, jnp.zeros((f_pad - f_total, H), w1.dtype)], axis=0)
    b1 = params["fc1_b"]

    # --- fc2: pad output dim to 128 lanes for an unmasked, lane-dense store.
    w2, b2 = params["fc2_w"], params["fc2_b"]
    C = int(w2.shape[1])
    c_pad = int(np.ceil(C / LANE) * LANE)
    w2p = jnp.concatenate([w2, jnp.zeros((H, c_pad - C), w2.dtype)], axis=1)
    b2p = jnp.concatenate([b2, jnp.zeros((1, c_pad - C), b2.dtype)], axis=1)

    # --- MXU operands in compute dtype; biases stay f32.
    cdt = jnp.dtype(compute_dtype)
    emb_c, wconv_c = emb.astype(cdt), wconv.astype(cdt)
    w1_c, w2_c = w1.astype(cdt), w2p.astype(cdt)
    bconv = bconv.astype(jnp.float32)
    b1 = b1.astype(jnp.float32)
    b2p = b2p.astype(jnp.float32)

    # --- batch tiling.
    TB = _pick_batch_tile(B, L, batch_tile)
    n_tiles = int(np.ceil(B / TB))
    B_pad = n_tiles * TB
    ids = token_ids.astype(jnp.int32)
    if B_pad > B:
        ids = jnp.concatenate([ids, jnp.zeros((B_pad - B, L), jnp.int32)], axis=0)
    # NOTE(synk): kept as (B_pad, L, 1) so the one-hot compare is a cheap lane
    # splat; the ids DMA is tiny either way.
    ids3 = ids.reshape(B_pad, L, 1)

    kernel = functools.partial(_fused_textcnn_kernel, seq_len=L, vocab=V,
                               branches=branches, f_pad=f_pad, k_max=k_max)

    csize = cdt.itemsize
    cost = pl.CostEstimate(
        flops=2 * B_pad * (L * (V * D + D * n_all) + f_pad * H + H * c_pad),
        transcendentals=0,
        bytes_accessed=(B_pad * L * 4 + B_pad * c_pad * 4
                        + (V * D + D * n_all + f_pad * H + H * c_pad) * csize
                        + (f_pad + H + c_pad) * 4))

    out = pl.pallas_call(
        kernel,
        out_shape=jax.ShapeDtypeStruct((B_pad, c_pad), jnp.float32),
        grid=(n_tiles,),
        in_specs=[
            pl.BlockSpec((TB, L, 1), lambda i: (i, 0, 0)),        # token ids
            _resident_weight_spec((V, D)),                        # embedding table
            _resident_weight_spec((D, n_all)),                    # conv weights
            pl.BlockSpec((1, f_pad), lambda i: (0, 0)),           # conv biases
            _resident_weight_spec((f_pad, H)),                    # fc1 weight
            pl.BlockSpec((1, H), lambda i: (0, 0)),               # fc1 bias
            _resident_weight_spec((H, c_pad)),                    # fc2 weight (padded)
            pl.BlockSpec((1, c_pad), lambda i: (0, 0)),           # fc2 bias (padded)
        ],
        out_specs=pl.BlockSpec((TB, c_pad), lambda i: (i, 0)),
        compiler_params=pltpu.CompilerParams(
            dimension_semantics=("parallel",),
            vmem_limit_bytes=32 * 1024 * 1024),
        cost_estimate=cost,
    )(ids3, emb_c, wconv_c, bconv, w1_c, b1, w2_c, b2p)

    return out[:B, :C]


# ----------------------------------------------------------------------------
# Parameter init (PyTorch-equivalent layouts/distributions).
# ----------------------------------------------------------------------------
def init_params(key, vocab_size, embed_dim, filter_sizes, num_filters, num_classes):
    keys = jax.random.split(key, 2 + 2 * len(filter_sizes) + 4)
    ki = iter(keys)
    params = {}
    params["embedding"] = jax.random.normal(next(ki), (vocab_size, embed_dim),
                                            dtype=jnp.float32)
    params["convs"] = []
    for k, f in zip(filter_sizes, num_filters):
        fan_in = embed_dim * k
        bound = 1.0 / np.sqrt(fan_in)
        w = jax.random.uniform(next(ki), (k, embed_dim, f), jnp.float32, -bound, bound)
        b = jax.random.uniform(next(ki), (1, f), jnp.float32, -bound, bound)
        params["convs"].append((w, b))
    f_total = int(np.sum(num_filters))
    bound1 = 1.0 / np.sqrt(f_total)
    params["fc1_w"] = jax.random.uniform(next(ki), (f_total, 256), jnp.float32,
                                         -bound1, bound1)
    params["fc1_b"] = jax.random.uniform(next(ki), (1, 256), jnp.float32,
                                         -bound1, bound1)
    bound2 = 1.0 / np.sqrt(256)
    params["fc2_w"] = jax.random.uniform(next(ki), (256, num_classes), jnp.float32,
                                         -bound2, bound2)
    params["fc2_b"] = jax.random.uniform(next(ki), (1, num_classes), jnp.float32,
                                         -bound2, bound2)
    return params


# ----------------------------------------------------------------------------
# Pure-JAX reference (mirrors the PyTorch forward) for correctness checking.
# ----------------------------------------------------------------------------
def cnn_model_reference(params, token_ids):
    x = params["embedding"][token_ids]                          # (B, L, D)
    pooled = []
    for (w, b) in params["convs"]:
        K = w.shape[0]
        L_out = x.shape[1] - K + 1
        conv = sum(jnp.einsum("bld,df->blf", x[:, j:j + L_out, :], w[j],
                              precision="highest") for j in range(K))
        conv = jax.nn.relu(conv + b[:, None, :])
        pooled.append(jnp.max(conv, axis=1))
    x_fc = jnp.concatenate(pooled, axis=1)
    h = jax.nn.relu(jnp.dot(x_fc, params["fc1_w"], precision="highest")
                    + params["fc1_b"])
    return jnp.dot(h, params["fc2_w"], precision="highest") + params["fc2_b"]


if __name__ == "__main__":
    # Small, module-consistent shapes.
    vocab_size = 50
    embed_dim = 32
    filter_sizes = [3, 4, 5]
    num_filters = [16, 24, 16]
    num_classes = 3
    batch = 32            # -> TB=16 (conv matmul M=256), 2 parallel grid tiles
    seq_len = 16

    key = jax.random.PRNGKey(0)
    pkey, dkey = jax.random.split(key)
    params = init_params(pkey, vocab_size, embed_dim, filter_sizes, num_filters,
                         num_classes)
    token_ids = jax.random.randint(dkey, (batch, seq_len), 0, vocab_size,
                                   dtype=jnp.int32)

    ref = jax.block_until_ready(cnn_model_reference(params, token_ids))

    # f32 compute path: tight correctness check of the kernel math.
    logits_f32 = jax.block_until_ready(
        cnn_model_forward(params, token_ids, compute_dtype=jnp.float32))
    assert logits_f32.shape == (batch, num_classes)
    np.testing.assert_allclose(np.asarray(logits_f32), np.asarray(ref),
                               rtol=1e-3, atol=1e-3)

    # Default bf16-operand path: shape/finiteness + loose agreement (expected
    # bf16 quantization of weights/activations).
    logits = jax.block_until_ready(cnn_model_forward(params, token_ids))
    assert logits.shape == (batch, num_classes)
    assert logits.dtype == jnp.float32
    assert bool(jnp.all(jnp.isfinite(logits)))
    np.testing.assert_allclose(np.asarray(logits), np.asarray(ref),
                               rtol=0.1, atol=0.25)

    print("KERNEL_OK")
</pallas_src>

<mosaic_0001>
module attributes {stable_mosaic.version = 11 : i64} {
  func.func @_fused_textcnn_kernel(%arg0: i32, %arg1: memref<16x16x1xi32, #tpu.memory_space<vmem>>, %arg2: memref<50x32xf32, #tpu.memory_space<vmem>>, %arg3: memref<32x640xf32, #tpu.memory_space<vmem>>, %arg4: memref<1x128xf32, #tpu.memory_space<vmem>>, %arg5: memref<128x256xf32, #tpu.memory_space<vmem>>, %arg6: memref<1x256xf32, #tpu.memory_space<vmem>>, %arg7: memref<256x128xf32, #tpu.memory_space<vmem>>, %arg8: memref<1x128xf32, #tpu.memory_space<vmem>>, %arg9: memref<16x128xf32, #tpu.memory_space<vmem>>) attributes {dimension_semantics = [#tpu.dimension_semantics<parallel>], iteration_bounds = array<i64: 2>, scalar_prefetch = 0 : i64, scratch_operands = 0 : i64, tpu.core_type = #tpu.core_type<tc>, window_params = [{transform_indices = @transform_0, window_bounds = array<i64: 16, 16, 1>}, {pipeline_mode = #tpu.pipeline_mode<synchronous>, transform_indices = @transform_1, window_bounds = array<i64: 50, 32>}, {pipeline_mode = #tpu.pipeline_mode<synchronous>, transform_indices = @transform_2, window_bounds = array<i64: 32, 640>}, {pipeline_mode = #tpu.pipeline_mode<synchronous>, transform_indices = @transform_3, window_bounds = array<i64: 1, 128>}, {pipeline_mode = #tpu.pipeline_mode<synchronous>, transform_indices = @transform_4, window_bounds = array<i64: 128, 256>}, {pipeline_mode = #tpu.pipeline_mode<synchronous>, transform_indices = @transform_5, window_bounds = array<i64: 1, 256>}, {pipeline_mode = #tpu.pipeline_mode<synchronous>, transform_indices = @transform_6, window_bounds = array<i64: 256, 128>}, {pipeline_mode = #tpu.pipeline_mode<synchronous>, transform_indices = @transform_7, window_bounds = array<i64: 1, 128>}, {transform_indices = @transform_8, window_bounds = array<i64: 16, 128>}]} {
    %c0 = arith.constant 0 : index
    %c0_0 = arith.constant 0 : index
    %c0_1 = arith.constant 0 : index
    %0 = vector.load %arg1[%c0, %c0_0, %c0_1] : memref<16x16x1xi32, #tpu.memory_space<vmem>>, vector<16x16x1xi32>
    %1 = tpu.iota {dimensions = array<i32: 2>} : vector<16x16x50xi32>
    %2 = vector.broadcast %0 : vector<16x16x1xi32> to vector<16x16x50xi32>
    %3 = arith.cmpi eq, %2, %1 : vector<16x16x50xi32>
    %4 = arith.extui %3 : vector<16x16x50xi1> to vector<16x16x50xi32>
    %5 = arith.sitofp %4 : vector<16x16x50xi32> to vector<16x16x50xf32>
    %6 = vector.shape_cast %5 : vector<16x16x50xf32> to vector<256x50xf32>
    %c0_2 = arith.constant 0 : index
    %c0_3 = arith.constant 0 : index
    %7 = vector.load %arg2[%c0_2, %c0_3] : memref<50x32xf32, #tpu.memory_space<vmem>>, vector<50x32xf32>
    %cst = arith.constant dense<0.000000e+00> : vector<256x32xf32>
    %8 = tpu.matmul %6, %7, %cst {dimension_numbers = #tpu.dot_dimension_numbers<[1], [0], [0], [1], [0, 0, 1, 1], [], []>} : vector<256x50xf32>, vector<50x32xf32>, vector<256x32xf32> -> vector<256x32xf32>
    %c0_4 = arith.constant 0 : index
    %c0_5 = arith.constant 0 : index
    %9 = vector.load %arg3[%c0_4, %c0_5] : memref<32x640xf32, #tpu.memory_space<vmem>>, vector<32x640xf32>
    %cst_6 = arith.constant dense<0.000000e+00> : vector<256x640xf32>
    %10 = tpu.matmul %8, %9, %cst_6 {dimension_numbers = #tpu.dot_dimension_numbers<[1], [0], [0], [1], [0, 0, 1, 1], [], []>} : vector<256x32xf32>, vector<32x640xf32>, vector<256x640xf32> -> vector<256x640xf32>
    %11 = vector.extract_strided_slice %10 {offsets = [0, 0], sizes = [256, 128], strides = [1, 1]} : vector<256x640xf32> to vector<256x128xf32>
    %12 = vector.extract_strided_slice %10 {offsets = [0, 128], sizes = [256, 128], strides = [1, 1]} : vector<256x640xf32> to vector<256x128xf32>
    %c255_i32 = arith.constant 255 : i32
    %13 = tpu.dynamic_rotate %12 by %c255_i32 dim 0 : vector<256x128xf32>, i32 -> vector<256x128xf32>
    %14 = arith.addf %11, %13 : vector<256x128xf32>
    %15 = vector.extract_strided_slice %10 {offsets = [0, 256], sizes = [256, 128], strides = [1, 1]} : vector<256x640xf32> to vector<256x128xf32>
    %c254_i32 = arith.constant 254 : i32
    %16 = tpu.dynamic_rotate %15 by %c254_i32 dim 0 : vector<256x128xf32>, i32 -> vector<256x128xf32>
    %17 = arith.addf %14, %16 : vector<256x128xf32>
    %18 = vector.extract_strided_slice %10 {offsets = [0, 384], sizes = [256, 128], strides = [1, 1]} : vector<256x640xf32> to vector<256x128xf32>
    %c253_i32 = arith.constant 253 : i32
    %19 = tpu.dynamic_rotate %18 by %c253_i32 dim 0 : vector<256x128xf32>, i32 -> vector<256x128xf32>
    %20 = arith.addf %17, %19 : vector<256x128xf32>
    %21 = vector.extract_strided_slice %10 {offsets = [0, 512], sizes = [256, 128], strides = [1, 1]} : vector<256x640xf32> to vector<256x128xf32>
    %c252_i32 = arith.constant 252 : i32
    %22 = tpu.dynamic_rotate %21 by %c252_i32 dim 0 : vector<256x128xf32>, i32 -> vector<256x128xf32>
    %23 = arith.addf %20, %22 : vector<256x128xf32>
    %24 = vector.shape_cast %23 : vector<256x128xf32> to vector<16x16x128xf32>
    %c0_7 = arith.constant 0 : index
    %c0_8 = arith.constant 0 : index
    %25 = vector.load %arg4[%c0_7, %c0_8] : memref<1x128xf32, #tpu.memory_space<vmem>>, vector<1x128xf32>
    %26 = vector.shape_cast %25 : vector<1x128xf32> to vector<1x1x128xf32>
    %27 = vector.broadcast %26 : vector<1x1x128xf32> to vector<16x16x128xf32>
    %28 = arith.addf %24, %27 : vector<16x16x128xf32>
    %29 = tpu.iota {dimensions = array<i32: 2>} : vector<1x1x128xi32>
    %c1_i32 = arith.constant 1 : i32
    %30 = vector.broadcast %c1_i32 : i32 to vector<1x1x128xi32>
    %c0_i32 = arith.constant 0 : i32
    %31 = vector.broadcast %c0_i32 : i32 to vector<1x1x128xi32>
    %32 = arith.cmpi sge, %29, %31 : vector<1x1x128xi32>
    %c16_i32 = arith.constant 16 : i32
    %33 = vector.broadcast %c16_i32 : i32 to vector<1x1x128xi32>
    %34 = arith.cmpi slt, %29, %33 : vector<1x1x128xi32>
    %35 = arith.andi %32, %34 : vector<1x1x128xi1>
    %c14_i32 = arith.constant 14 : i32
    %36 = vector.broadcast %c14_i32 : i32 to vector<1x1x128xi32>
    %37 = arith.select %35, %36, %30 : vector<1x1x128xi1>, vector<1x1x128xi32>
    %c16_i32_9 = arith.constant 16 : i32
    %38 = vector.broadcast %c16_i32_9 : i32 to vector<1x1x128xi32>
    %39 = arith.cmpi sge, %29, %38 : vector<1x1x128xi32>
    %c40_i32 = arith.constant 40 : i32
    %40 = vector.broadcast %c40_i32 : i32 to vector<1x1x128xi32>
    %41 = arith.cmpi slt, %29, %40 : vector<1x1x128xi32>
    %42 = arith.andi %39, %41 : vector<1x1x128xi1>
    %c13_i32 = arith.constant 13 : i32
    %43 = vector.broadcast %c13_i32 : i32 to vector<1x1x128xi32>
    %44 = arith.select %42, %43, %37 : vector<1x1x128xi1>, vector<1x1x128xi32>
    %c40_i32_10 = arith.constant 40 : i32
    %45 = vector.broadcast %c40_i32_10 : i32 to vector<1x1x128xi32>
    %46 = arith.cmpi sge, %29, %45 : vector<1x1x128xi32>
    %c56_i32 = arith.constant 56 : i32
    %47 = vector.broadcast %c56_i32 : i32 to vector<1x1x128xi32>
    %48 = arith.cmpi slt, %29, %47 : vector<1x1x128xi32>
    %49 = arith.andi %46, %48 : vector<1x1x128xi1>
    %c12_i32 = arith.constant 12 : i32
    %50 = vector.broadcast %c12_i32 : i32 to vector<1x1x128xi32>
    %51 = arith.select %49, %50, %44 : vector<1x1x128xi1>, vector<1x1x128xi32>
    %52 = tpu.iota {dimensions = array<i32: 1>} : vector<16x16x128xi32>
    %53 = vector.broadcast %51 : vector<1x1x128xi32> to vector<16x16x128xi32>
    %54 = arith.cmpi slt, %52, %53 : vector<16x16x128xi32>
    %cst_11 = arith.constant -1.000000e+30 : f32
    %55 = vector.broadcast %cst_11 : f32 to vector<16x16x128xf32>
    %56 = arith.select %54, %28, %55 : vector<16x16x128xi1>, vector<16x16x128xf32>
    %cst_12 = arith.constant dense<0xFF800000> : vector<16x128xf32>
    %57 = vector.multi_reduction <maximumf>, %56, %cst_12 [1] : vector<16x16x128xf32> to vector<16x128xf32>
    %cst_13 = arith.constant 0.000000e+00 : f32
    %58 = vector.broadcast %cst_13 : f32 to vector<16x128xf32>
    %59 = arith.maximumf %57, %58 : vector<16x128xf32>
    %c0_14 = arith.constant 0 : index
    %c0_15 = arith.constant 0 : index
    %60 = vector.load %arg5[%c0_14, %c0_15] : memref<128x256xf32, #tpu.memory_space<vmem>>, vector<128x256xf32>
    %cst_16 = arith.constant dense<0.000000e+00> : vector<16x256xf32>
    %61 = tpu.matmul %59, %60, %cst_16 {dimension_numbers = #tpu.dot_dimension_numbers<[1], [0], [0], [1], [0, 0, 1, 1], [], []>} : vector<16x128xf32>, vector<128x256xf32>, vector<16x256xf32> -> vector<16x256xf32>
    %c0_17 = arith.constant 0 : index
    %c0_18 = arith.constant 0 : index
    %62 = vector.load %arg6[%c0_17, %c0_18] : memref<1x256xf32, #tpu.memory_space<vmem>>, vector<1x256xf32>
    %63 = vector.broadcast %62 : vector<1x256xf32> to vector<16x256xf32>
    %64 = arith.addf %61, %63 : vector<16x256xf32>
    %cst_19 = arith.constant 0.000000e+00 : f32
    %65 = vector.broadcast %cst_19 : f32 to vector<16x256xf32>
    %66 = arith.maximumf %64, %65 : vector<16x256xf32>
    %c0_20 = arith.constant 0 : index
    %c0_21 = arith.constant 0 : index
    %67 = vector.load %arg7[%c0_20, %c0_21] : memref<256x128xf32, #tpu.memory_space<vmem>>, vector<256x128xf32>
    %cst_22 = arith.constant dense<0.000000e+00> : vector<16x128xf32>
    %68 = tpu.matmul %66, %67, %cst_22 {dimension_numbers = #tpu.dot_dimension_numbers<[1], [0], [0], [1], [0, 0, 1, 1], [], []>} : vector<16x256xf32>, vector<256x128xf32>, vector<16x128xf32> -> vector<16x128xf32>
    %c0_23 = arith.constant 0 : index
    %c0_24 = arith.constant 0 : index
    %69 = vector.load %arg8[%c0_23, %c0_24] : memref<1x128xf32, #tpu.memory_space<vmem>>, vector<1x128xf32>
    %70 = vector.broadcast %69 : vector<1x128xf32> to vector<16x128xf32>
    %71 = arith.addf %68, %70 : vector<16x128xf32>
    %c0_25 = arith.constant 0 : index
    %c0_26 = arith.constant 0 : index
    %72 = vector.load %arg9[%c0_25, %c0_26] : memref<16x128xf32, #tpu.memory_space<vmem>>, vector<16x128xf32>
    tpu.vector_store %arg9[%c0_25, %c0_26], %71 {strides = array<i32>} : memref<16x128xf32, #tpu.memory_space<vmem>>, vector<16x128xf32>,
    return
  }
  func.func @transform_0(%arg0: i32) -> (i32, i32, i32) {
    %c0_i32 = arith.constant 0 : i32
    %c0_i32_0 = arith.constant 0 : i32
    %c0_i32_1 = arith.constant 0 : i32
    return %arg0, %c0_i32, %c0_i32_0 : i32, i32, i32
  }
  func.func @transform_1(%arg0: i32) -> (i32, i32) {
    %c0_i32 = arith.constant 0 : i32
    %c0_i32_0 = arith.constant 0 : i32
    %c0_i32_1 = arith.constant 0 : i32
    return %c0_i32, %c0_i32_0 : i32, i32
  }
  func.func @transform_2(%arg0: i32) -> (i32, i32) {
    %c0_i32 = arith.constant 0 : i32
    %c0_i32_0 = arith.constant 0 : i32
    %c0_i32_1 = arith.constant 0 : i32
    return %c0_i32, %c0_i32_0 : i32, i32
  }
  func.func @transform_3(%arg0: i32) -> (i32, i32) {
    %c0_i32 = arith.constant 0 : i32
    %c0_i32_0 = arith.constant 0 : i32
    %c0_i32_1 = arith.constant 0 : i32
    return %c0_i32, %c0_i32_0 : i32, i32
  }
  func.func @transform_4(%arg0: i32) -> (i32, i32) {
    %c0_i32 = arith.constant 0 : i32
    %c0_i32_0 = arith.constant 0 : i32
    %c0_i32_1 = arith.constant 0 : i32
    return %c0_i32, %c0_i32_0 : i32, i32
  }
  func.func @transform_5(%arg0: i32) -> (i32, i32) {
    %c0_i32 = arith.constant 0 : i32
    %c0_i32_0 = arith.constant 0 : i32
    %c0_i32_1 = arith.constant 0 : i32
    return %c0_i32, %c0_i32_0 : i32, i32
  }
  func.func @transform_6(%arg0: i32) -> (i32, i32) {
    %c0_i32 = arith.constant 0 : i32
    %c0_i32_0 = arith.constant 0 : i32
    %c0_i32_1 = arith.constant 0 : i32
    return %c0_i32, %c0_i32_0 : i32, i32
  }
  func.func @transform_7(%arg0: i32) -> (i32, i32) {
    %c0_i32 = arith.constant 0 : i32
    %c0_i32_0 = arith.constant 0 : i32
    %c0_i32_1 = arith.constant 0 : i32
    return %c0_i32, %c0_i32_0 : i32, i32
  }
  func.func @transform_8(%arg0: i32) -> (i32, i32) {
    %c0_i32 = arith.constant 0 : i32
    %c0_i32_0 = arith.constant 0 : i32
    return %arg0, %c0_i32 : i32, i32
  }
}

</mosaic_0001>

<llo_original>
// kernel: tpu_custom_call.1
$region0: #{tpu_custom_call.1}
  #allocation0 [shape = 'u32[]', space=smem, size = 0x4, offset = 0x4, fixed_abs, tag = 'smem constant byte address 0x4 - core index']
  #allocation1 [shape = 'u32[144,128]{1,0:T(1,128)}', space=vmem, size = 0x12000, scoped, tag = 'internal scratch']
  %s0 = inlined_call_operand.vmem [shape: s32[32,16,1], index: 0, kind: input, shape index: {}]
  %s1 = inlined_call_operand.vmem [shape: f32[50,32], index: 1, kind: input, shape index: {}]
  %s2 = inlined_call_operand.hbm [shape: f32[32,640], index: 2, kind: input, shape index: {}]
  %s3 = inlined_call_operand.vmem [shape: f32[1,128], index: 3, kind: input, shape index: {}]
  %s4 = inlined_call_operand.vmem [shape: f32[128,256], index: 4, kind: input, shape index: {}]
  %s5 = inlined_call_operand.vmem [shape: f32[1,256], index: 5, kind: input, shape index: {}]
  %s6 = inlined_call_operand.vmem [shape: f32[256,128], index: 6, kind: input, shape index: {}]
  %s7 = inlined_call_operand.vmem [shape: f32[1,128], index: 7, kind: input, shape index: {}]
  %s8 = inlined_call_operand.hbm [shape: f32[32,128], index: 8, kind: output, shape index: {}]
  %s9 = sld [smem:[#allocation0]]
  $region69: #{tpu_custom_call.1} parent=0
    _
  %s11 = ssub.s32 1, %s9
  %s12 = scalar_select 0, %s11, %s9
  $region1: #{tpu_custom_call.1} parent=0
    #allocation2 [shape = 'u8[81920]{0}', space=vmem, size = 0x14000, scoped, tag = 'input window, operand 2, single buffered']
    #allocation3 [shape = 's32[2]{0}', space=sflag, size = 0x8, scoped, tag = 'scoped memory for tpu_custom_call.1']
    #allocation4 [shape = 's32[2]{0}', space=sflag, size = 0x8, scoped, tag = 'scoped memory for tpu_custom_call.1']
    #allocation5 [shape = 'u8[16384]{0}', space=vmem, size = 0x4000, scoped, tag = 'output window, operand 0']
    %13 = vsyncpa [#allocation3], 0
    %14 = vsyncpa [#allocation4], 0
    %s15 = scalar_lea.sflag [#allocation4], 1
    %16 = vsyncpa %s15, 0
    loop: start=0, step=1, limit=4
    $region2: #{tpu_custom_call.1} parent=1 // loop_pre_header
      _
    $region3: #{tpu_custom_call.1} parent=1 // loop_header
      %s18 = sphi 0, %s22
      %p19 = scmp.ge.s32.totalorder %s18, 4
      %s28 = sphi 0, %s30
      %s31 = sphi 0, %s28
      %s32 = sphi 0, %s31
      %s48 = sphi 0, %s32
      %s52 = sphi 0, %s52
      %s54 = sphi 0, %s52
      %s55 = sphi 0, %s54
      %s69 = sphi 0, %s55
      %s73 = sphi 0, %s73
      %s75 = sphi 0, %s73
      %s76 = sphi 0, %s75
      %s90 = sphi 0, %s76
      %s94 = sphi 0, %s94
      %s96 = sphi 0, %s94
      %s97 = sphi 0, %s96
      %s111 = sphi 0, %s97
      %s115 = sphi 0, %s115
      %s117 = sphi 0, %s115
      %s118 = sphi 0, %s117
      %s132 = sphi 0, %s118
      %s136 = sphi 0, %s136
      %s138 = sphi 0, %s136
      %s139 = sphi 0, %s138
      %s153 = sphi 0, %s139
      %s157 = sphi 0, %s157
      %s159 = sphi 0, %s157
      %s160 = sphi 0, %s159
      %s174 = sphi 0, %s160
      %s178 = sphi 0, %s178
      %s180 = sphi 0, %s178
      %s181 = sphi 0, %s180
      %s195 = sphi 0, %s181
      %s201 = sphi 0, %s203
      %s204 = sphi 0, %s201
      %s205 = sphi 0, %s204
      %s221 = sphi 0, %s205
    $region4: #{tpu_custom_call.1} parent=1 // loop_header_branch
      %21 = sbr.rel (%p19) target = $region8
    $region5: #{tpu_custom_call.1} parent=1 // loop_body
      %s23 = ssub.s32 %s18, 1
      %s24 = ssub.s32 %s18, 2
      %s25 = sadd.s32 %s18, 1
      %s26 = ssub.s32 %s18, %s25
      %p27 = scmp.eq.s32.totalorder %s26, 0
      %s29 = sadd.s32 %s28, 1
      %s30 = scalar_select %p27, %s28, %s29
      %p33 = pneg %p27
      %p34 = scmp.eq.s32.totalorder %s18, 1
      %p35 = por %p33, %p34
      %p36 = scmp.ne.s32.totalorder %s28, %s31
      %p37 = scmp.eq.s32.totalorder %s18, 0
      %p38 = por %p36, %p37
      %p39 = scmp.ne.s32.totalorder %s28, %s31
      %p40 = scmp.eq.s32.totalorder %s23, 1
      %p41 = por %p39, %p40
      %p42 = scmp.ne.s32.totalorder %s31, %s32
      %p43 = scmp.eq.s32.totalorder %s23, 0
      %p44 = por %p42, %p43
      %p45 = scmp.ne.s32.totalorder %s31, %s32
      %p46 = scmp.eq.s32.totalorder %s24, 1
      %p47 = por %p45, %p46
      %p49 = scmp.ne.s32.totalorder %s32, %s48
      %p50 = scmp.eq.s32.totalorder %s24, 0
      %p51 = por %p49, %p50
      %s53 = sadd.s32 %s52, 1
      %p56 = scmp.eq.s32.totalorder %s18, 1
      %p57 = scmp.ne.s32.totalorder %s52, %s54
      %p58 = scmp.eq.s32.totalorder %s18, 0
      %p59 = por %p57, %p58
      %p60 = scmp.ne.s32.totalorder %s52, %s54
      %p61 = scmp.eq.s32.totalorder %s23, 1
      %p62 = por %p60, %p61
      %p63 = scmp.ne.s32.totalorder %s54, %s55
      %p64 = scmp.eq.s32.totalorder %s23, 0
      %p65 = por %p63, %p64
      %p66 = scmp.ne.s32.totalorder %s54, %s55
      %p67 = scmp.eq.s32.totalorder %s24, 1
      %p68 = por %p66, %p67
      %p70 = scmp.ne.s32.totalorder %s55, %s69
      %p71 = scmp.eq.s32.totalorder %s24, 0
      %p72 = por %p70, %p71
      %s74 = sadd.s32 %s73, 1
      %p77 = scmp.eq.s32.totalorder %s18, 1
      %p78 = scmp.ne.s32.totalorder %s73, %s75
      %p79 = scmp.eq.s32.totalorder %s18, 0
      %p80 = por %p78, %p79
      %p81 = scmp.ne.s32.totalorder %s73, %s75
      %p82 = scmp.eq.s32.totalorder %s23, 1
      %p83 = por %p81, %p82
      %p84 = scmp.ne.s32.totalorder %s75, %s76
      %p85 = scmp.eq.s32.totalorder %s23, 0
      %p86 = por %p84, %p85
      %p87 = scmp.ne.s32.totalorder %s75, %s76
      %p88 = scmp.eq.s32.totalorder %s24, 1
      %p89 = por %p87, %p88
      %p91 = scmp.ne.s32.totalorder %s76, %s90
      %p92 = scmp.eq.s32.totalorder %s24, 0
      %p93 = por %p91, %p92
      %s95 = sadd.s32 %s94, 1
      %p98 = scmp.eq.s32.totalorder %s18, 1
      %p99 = scmp.ne.s32.totalorder %s94, %s96
      %p100 = scmp.eq.s32.totalorder %s18, 0
      %p101 = por %p99, %p100
      %p102 = scmp.ne.s32.totalorder %s94, %s96
      %p103 = scmp.eq.s32.totalorder %s23, 1
      %p104 = por %p102, %p103
      %p105 = scmp.ne.s32.totalorder %s96, %s97
      %p106 = scmp.eq.s32.totalorder %s23, 0
      %p107 = por %p105, %p106
      %p108 = scmp.ne.s32.totalorder %s96, %s97
      %p109 = scmp.eq.s32.totalorder %s24, 1
      %p110 = por %p108, %p109
      %p112 = scmp.ne.s32.totalorder %s97, %s111
      %p113 = scmp.eq.s32.totalorder %s24, 0
      %p114 = por %p112, %p113
      %s116 = sadd.s32 %s115, 1
      %p119 = scmp.eq.s32.totalorder %s18, 1
      %p120 = scmp.ne.s32.totalorder %s115, %s117
      %p121 = scmp.eq.s32.totalorder %s18, 0
      %p122 = por %p120, %p121
      %p123 = scmp.ne.s32.totalorder %s115, %s117
      %p124 = scmp.eq.s32.totalorder %s23, 1
      %p125 = por %p123, %p124
      %p126 = scmp.ne.s32.totalorder %s117, %s118
      %p127 = scmp.eq.s32.totalorder %s23, 0
      %p128 = por %p126, %p127
      %p129 = scmp.ne.s32.totalorder %s117, %s118
      %p130 = scmp.eq.s32.totalorder %s24, 1
      %p131 = por %p129, %p130
      %p133 = scmp.ne.s32.totalorder %s118, %s132
      %p134 = scmp.eq.s32.totalorder %s24, 0
      %p135 = por %p133, %p134
      %s137 = sadd.s32 %s136, 1
      %p140 = scmp.eq.s32.totalorder %s18, 1
      %p141 = scmp.ne.s32.totalorder %s136, %s138
      %p142 = scmp.eq.s32.totalorder %s18, 0
      %p143 = por %p141, %p142
      %p144 = scmp.ne.s32.totalorder %s136, %s138
      %p145 = scmp.eq.s32.totalorder %s23, 1
      %p146 = por %p144, %p145
      %p147 = scmp.ne.s32.totalorder %s138, %s139
      %p148 = scmp.eq.s32.totalorder %s23, 0
      %p149 = por %p147, %p148
      %p150 = scmp.ne.s32.totalorder %s138, %s139
      %p151 = scmp.eq.s32.totalorder %s24, 1
      %p152 = por %p150, %p151
      %p154 = scmp.ne.s32.totalorder %s139, %s153
      %p155 = scmp.eq.s32.totalorder %s24, 0
      %p156 = por %p154, %p155
      %s158 = sadd.s32 %s157, 1
      %p161 = scmp.eq.s32.totalorder %s18, 1
      %p162 = scmp.ne.s32.totalorder %s157, %s159
      %p163 = scmp.eq.s32.totalorder %s18, 0
      %p164 = por %p162, %p163
      %p165 = scmp.ne.s32.totalorder %s157, %s159
      %p166 = scmp.eq.s32.totalorder %s23, 1
      %p167 = por %p165, %p166
      %p168 = scmp.ne.s32.totalorder %s159, %s160
      %p169 = scmp.eq.s32.totalorder %s23, 0
      %p170 = por %p168, %p169
      %p171 = scmp.ne.s32.totalorder %s159, %s160
      %p172 = scmp.eq.s32.totalorder %s24, 1
      %p173 = por %p171, %p172
      %p175 = scmp.ne.s32.totalorder %s160, %s174
      %p176 = scmp.eq.s32.totalorder %s24, 0
      %p177 = por %p175, %p176
      %s179 = sadd.s32 %s178, 1
      %p182 = scmp.eq.s32.totalorder %s18, 1
      %p183 = scmp.ne.s32.totalorder %s178, %s180
      %p184 = scmp.eq.s32.totalorder %s18, 0
      %p185 = por %p183, %p184
      %p186 = scmp.ne.s32.totalorder %s178, %s180
      %p187 = scmp.eq.s32.totalorder %s23, 1
      %p188 = por %p186, %p187
      %p189 = scmp.ne.s32.totalorder %s180, %s181
      %p190 = scmp.eq.s32.totalorder %s23, 0
      %p191 = por %p189, %p190
      %p192 = scmp.ne.s32.totalorder %s180, %s181
      %p193 = scmp.eq.s32.totalorder %s24, 1
      %p194 = por %p192, %p193
      %p196 = scmp.ne.s32.totalorder %s181, %s195
      %p197 = scmp.eq.s32.totalorder %s24, 0
      %p198 = por %p196, %p197
      %s199 = ssub.s32 %s18, %s25
      %p200 = scmp.eq.s32.totalorder %s199, 0
      %s202 = sadd.s32 %s201, 1
      %s203 = scalar_select %p200, %s201, %s202
      %p206 = pneg %p200
      %p207 = scmp.eq.s32.totalorder %s18, 1
      %p208 = por %p206, %p207
      %p209 = scmp.ne.s32.totalorder %s201, %s204
      %p210 = scmp.eq.s32.totalorder %s18, 0
      %p211 = por %p209, %p210
      %p212 = scmp.ne.s32.totalorder %s201, %s204
      %p213 = scmp.eq.s32.totalorder %s23, 1
      %p214 = por %p212, %p213
      %p215 = scmp.ne.s32.totalorder %s204, %s205
      %p216 = scmp.eq.s32.totalorder %s23, 0
      %p217 = por %p215, %p216
      %p218 = scmp.ne.s32.totalorder %s204, %s205
      %p219 = scmp.eq.s32.totalorder %s24, 1
      %p220 = por %p218, %p219
      %p222 = scmp.ne.s32.totalorder %s205, %s221
      %p223 = scmp.eq.s32.totalorder %s24, 0
      %p224 = por %p222, %p223
      %p225 = scmp.le.s32.totalorder 1, %s18
      %p226 = scmp.lt.s32.totalorder %s18, 3
      %p227 = pnand %p225, %p226
      %p228 = pneg %p227
      // Predicated region
      $region9: #{tpu_custom_call.1} parent=5 // pred_check
        _
      $region10: #{tpu_custom_call.1} parent=5 // pred_check_branch
        %230 = sbr.rel (%p227) target = $region12
      $region11: #{tpu_custom_call.1} parent=5 // pred_region
        %s231 = ssub.s32 %s18, 1
        // Predicated region
        $region13: #{tpu_custom_call.1} parent=11 // pred_check
          %p232 = pneg %p65
        $region14: #{tpu_custom_call.1} parent=11 // pred_check_branch
          %234 = sbr.rel (%p232) target = $region16
        $region15: #{tpu_custom_call.1} parent=11 // pred_region
          _
        $region16: #{tpu_custom_call.1} parent=11 // pred_fallthru
          _
        // Predicated region
        $region17: #{tpu_custom_call.1} parent=11 // pred_check
          %p235 = pneg %p86
        $region18: #{tpu_custom_call.1} parent=11 // pred_check_branch
          %237 = sbr.rel (%p235) target = $region20
        $region19: #{tpu_custom_call.1} parent=11 // pred_region
          %s239 = ssub.s32 2560, 2560
          %240 = vsyncadd [#allocation3], %s239
          %s241 = sshll.u32 [#allocation2], 4
          %s242 = int_to_ptr.vmem [resolvable:$true] %s241
          %247 = dma.hbm_to_vmem [thread:$0]  %s2, 2560, %s242, [#allocation3], 640, 640, 40
        $region20: #{tpu_custom_call.1} parent=11 // pred_fallthru
          _
        // Predicated region
        $region21: #{tpu_custom_call.1} parent=11 // pred_check
          %p248 = pneg %p107
        $region22: #{tpu_custom_call.1} parent=11 // pred_check_branch
          %250 = sbr.rel (%p248) target = $region24
        $region23: #{tpu_custom_call.1} parent=11 // pred_region
          _
        $region24: #{tpu_custom_call.1} parent=11 // pred_fallthru
          _
        // Predicated region
        $region25: #{tpu_custom_call.1} parent=11 // pred_check
          %p251 = pneg %p128
        $region26: #{tpu_custom_call.1} parent=11 // pred_check_branch
          %253 = sbr.rel (%p251) target = $region28
        $region27: #{tpu_custom_call.1} parent=11 // pred_region
          _
        $region28: #{tpu_custom_call.1} parent=11 // pred_fallthru
          _
        // Predicated region
        $region29: #{tpu_custom_call.1} parent=11 // pred_check
          %p254 = pneg %p149
        $region30: #{tpu_custom_call.1} parent=11 // pred_check_branch
          %256 = sbr.rel (%p254) target = $region32
        $region31: #{tpu_custom_call.1} parent=11 // pred_region
          _
        $region32: #{tpu_custom_call.1} parent=11 // pred_fallthru
          _
        // Predicated region
        $region33: #{tpu_custom_call.1} parent=11 // pred_check
          %p257 = pneg %p170
        $region34: #{tpu_custom_call.1} parent=11 // pred_check_branch
          %259 = sbr.rel (%p257) target = $region36
        $region35: #{tpu_custom_call.1} parent=11 // pred_region
          _
        $region36: #{tpu_custom_call.1} parent=11 // pred_fallthru
          _
        // Predicated region
        $region37: #{tpu_custom_call.1} parent=11 // pred_check
          %p260 = pneg %p191
        $region38: #{tpu_custom_call.1} parent=11 // pred_check_branch
          %262 = sbr.rel (%p260) target = $region40
        $region39: #{tpu_custom_call.1} parent=11 // pred_region
          _
        $region40: #{tpu_custom_call.1} parent=11 // pred_fallthru
          _
      $region12: #{tpu_custom_call.1} parent=5 // pred_fallthru
        _
      %p263 = scmp.lt.s32.totalorder %s18, 2
      // Predicated region
      $region41: #{tpu_custom_call.1} parent=5 // pred_check
        %p264 = pneg %p263
      $region42: #{tpu_custom_call.1} parent=5 // pred_check_branch
        %266 = sbr.rel (%p264) target = $region44
      $region43: #{tpu_custom_call.1} parent=5 // pred_region
        // Predicated region
        $region45: #{tpu_custom_call.1} parent=43 // pred_check
          %p267 = pneg %p38
        $region46: #{tpu_custom_call.1} parent=43 // pred_check_branch
          %269 = sbr.rel (%p267) target = $region48
        $region47: #{tpu_custom_call.1} parent=43 // pred_region
          %s270 = smul.u32 16, %s18
          %p271 = scmp.lt.s32.totalorder %s270, 31
          %s272 = scalar_select %p271, %s270, 31
          %s273 = smul.addr %s272, 2
          %s274 = smul.addr %s273, 8
          %s275 = scalar_lea.vmem %s0, %s274
          %s276 = smul.u32 16, %s18
        $region48: #{tpu_custom_call.1} parent=43 // pred_fallthru
          _
      $region44: #{tpu_custom_call.1} parent=5 // pred_fallthru
        _
      %p277 = scmp.le.s32.totalorder 1, %s18
      %p278 = scmp.lt.s32.totalorder %s18, 3
      %p279 = pnand %p277, %p278
      %p280 = pneg %p279
      // Predicated region
      $region49: #{tpu_custom_call.1} parent=5 // pred_check
        _
      $region50: #{tpu_custom_call.1} parent=5 // pred_check_branch
        %282 = sbr.rel (%p279) target = $region52
      $region51: #{tpu_custom_call.1} parent=5 // pred_region
        %s283 = ssub.s32 %s18, 1
        // Predicated region
        $region53: #{tpu_custom_call.1} parent=51 // pred_check
          %p284 = pneg %p86
        $region54: #{tpu_custom_call.1} parent=51 // pred_check_branch
          %286 = sbr.rel (%p284) target = $region56
        $region55: #{tpu_custom_call.1} parent=51 // pred_region
          %287 = dma.done [#allocation3], 2560
        $region56: #{tpu_custom_call.1} parent=51 // pred_fallthru
          _
        %s288 = smul.u32 16, %s23
        %p289 = scmp.lt.s32.totalorder %s288, 31
        %s290 = scalar_select %p289, %s288, 31
        %s291 = smul.addr %s290, 2
        %s292 = smul.addr %s291, 8
        %s293 = scalar_lea.vmem %s0, %s292
        %p294 = pneg %p44
        %p295 = pneg %p41
        %p296 = pneg %p65
        %p297 = pneg %p62
        %p298 = pneg %p86
        %p299 = pneg %p83
        %p300 = pneg %p107
        %p301 = pneg %p104
        %p302 = pneg %p128
        %p303 = pneg %p125
        %p304 = pneg %p149
        %p305 = pneg %p146
        %p306 = pneg %p170
        %p307 = pneg %p167
        %p308 = pneg %p191
        %p309 = pneg %p188
        %p310 = pneg %p217
        %p311 = pneg %p214
        %s312 = sand.u32 %s204, 1
        %s313 = scalar_lea.sflag [#allocation4], %s312
        %s314 = sand.u32 %s204, 1
        %s315 = smul.addr %s314, 16
        %s316 = scalar_lea.vmem [#allocation5], %s315
        %s317 = smul.u32 16, %s23
        %p318 = scmp.lt.s32.totalorder %s317, 31
        %s319 = scalar_select %p318, %s317, 31
        %s320 = smul.addr %s319, 2
        %s321 = smul.addr %s320, 8
        %s322 = scalar_lea.vmem %s0, %s321
        %s323 = smul.u32 16, %s23
        %s324 = smul.u32 2, %s23
        %v325 = vld [vmem:[%s322] sm:$0xff]
        %v326 = vld [vmem:[%s322 + $0x8] sm:$0xff]
        %v327 = vld [vmem:[%s322 + $0x10] sm:$0xff]
        %v328 = vld [vmem:[%s322 + $0x18] sm:$0xff]
        %v329 = vld [vmem:[%s322 + $0x20] sm:$0xff]
        %v330 = vld [vmem:[%s322 + $0x28] sm:$0xff]
        %v331 = vld [vmem:[%s322 + $0x30] sm:$0xff]
        %v332 = vld [vmem:[%s322 + $0x38] sm:$0xff]
        %v333 = vld [vmem:[%s322 + $0x40] sm:$0xff]
        %v334 = vld [vmem:[%s322 + $0x48] sm:$0xff]
        %v335 = vld [vmem:[%s322 + $0x50] sm:$0xff]
        %v336 = vld [vmem:[%s322 + $0x58] sm:$0xff]
        %v337 = vld [vmem:[%s322 + $0x60] sm:$0xff]
        %v338 = vld [vmem:[%s322 + $0x68] sm:$0xff]
        %v339 = vld [vmem:[%s322 + $0x70] sm:$0xff]
        %v340 = vld [vmem:[%s322 + $0x78] sm:$0xff]
        %v341 = vld [vmem:[%s322 + $0x80] sm:$0xff]
        %v342 = vld [vmem:[%s322 + $0x88] sm:$0xff]
        %v343 = vld [vmem:[%s322 + $0x90] sm:$0xff]
        %v344 = vld [vmem:[%s322 + $0x98] sm:$0xff]
        %v345 = vld [vmem:[%s322 + $0xa0] sm:$0xff]
        %v346 = vld [vmem:[%s322 + $0xa8] sm:$0xff]
        %v347 = vld [vmem:[%s322 + $0xb0] sm:$0xff]
        %v348 = vld [vmem:[%s322 + $0xb8] sm:$0xff]
        %v349 = vld [vmem:[%s322 + $0xc0] sm:$0xff]
        %v350 = vld [vmem:[%s322 + $0xc8] sm:$0xff]
        %v351 = vld [vmem:[%s322 + $0xd0] sm:$0xff]
        %v352 = vld [vmem:[%s322 + $0xd8] sm:$0xff]
        %v353 = vld [vmem:[%s322 + $0xe0] sm:$0xff]
        %v354 = vld [vmem:[%s322 + $0xe8] sm:$0xff]
        %v355 = vld [vmem:[%s322 + $0xf0] sm:$0xff]
        %v356 = vld [vmem:[%s322 + $0xf8] sm:$0xff]
        %v357 = vlaneseq
        %v358 = vand.u32 %v357, 127
        %359 = vset.pattern.permute.xlu0 0
        %360 = vperm.xlu0 %359, %v325
        %v361 = vpop.permute.xlu0 %360
        %362 = vset.pattern.permute.xlu0 0
        %363 = vperm.xlu0 %362, %v326
        %v364 = vpop.permute.xlu0 %363
        %365 = vset.pattern.permute.xlu0 0
        %366 = vperm.xlu0 %365, %v327
        %v367 = vpop.permute.xlu0 %366
        %368 = vset.pattern.permute.xlu0 0
        %369 = vperm.xlu0 %368, %v328
        %v370 = vpop.permute.xlu0 %369
        %371 = vset.pattern.permute.xlu0 0
        %372 = vperm.xlu0 %371, %v329
        %v373 = vpop.permute.xlu0 %372
        %374 = vset.pattern.permute.xlu0 0
        %375 = vperm.xlu0 %374, %v330
        %v376 = vpop.permute.xlu0 %375
        %377 = vset.pattern.permute.xlu0 0
        %378 = vperm.xlu0 %377, %v331
        %v379 = vpop.permute.xlu0 %378
        %380 = vset.pattern.permute.xlu0 0
        %381 = vperm.xlu0 %380, %v332
        %v382 = vpop.permute.xlu0 %381
        %383 = vset.pattern.permute.xlu0 0
        %384 = vperm.xlu0 %383, %v333
        %v385 = vpop.permute.xlu0 %384
        %386 = vset.pattern.permute.xlu0 0
        %387 = vperm.xlu0 %386, %v334
        %v388 = vpop.permute.xlu0 %387
        %389 = vset.pattern.permute.xlu0 0
        %390 = vperm.xlu0 %389, %v335
        %v391 = vpop.permute.xlu0 %390
        %392 = vset.pattern.permute.xlu0 0
        %393 = vperm.xlu0 %392, %v336
        %v394 = vpop.permute.xlu0 %393
        %395 = vset.pattern.permute.xlu0 0
        %396 = vperm.xlu0 %395, %v337
        %v397 = vpop.permute.xlu0 %396
        %398 = vset.pattern.permute.xlu0 0
        %399 = vperm.xlu0 %398, %v338
        %v400 = vpop.permute.xlu0 %399
        %401 = vset.pattern.permute.xlu0 0
        %402 = vperm.xlu0 %401, %v339
        %v403 = vpop.permute.xlu0 %402
        %404 = vset.pattern.permute.xlu0 0
        %405 = vperm.xlu0 %404, %v340
        %v406 = vpop.permute.xlu0 %405
        %407 = vset.pattern.permute.xlu0 0
        %408 = vperm.xlu0 %407, %v341
        %v409 = vpop.permute.xlu0 %408
        %410 = vset.pattern.permute.xlu0 0
        %411 = vperm.xlu0 %410, %v342
        %v412 = vpop.permute.xlu0 %411
        %413 = vset.pattern.permute.xlu0 0
        %414 = vperm.xlu0 %413, %v343
        %v415 = vpop.permute.xlu0 %414
        %416 = vset.pattern.permute.xlu0 0
        %417 = vperm.xlu0 %416, %v344
        %v418 = vpop.permute.xlu0 %417
        %419 = vset.pattern.permute.xlu0 0
        %420 = vperm.xlu0 %419, %v345
        %v421 = vpop.permute.xlu0 %420
        %422 = vset.pattern.permute.xlu0 0
        %423 = vperm.xlu0 %422, %v346
        %v424 = vpop.permute.xlu0 %423
        %425 = vset.pattern.permute.xlu0 0
        %426 = vperm.xlu0 %425, %v347
        %v427 = vpop.permute.xlu0 %426
        %428 = vset.pattern.permute.xlu0 0
        %429 = vperm.xlu0 %428, %v348
        %v430 = vpop.permute.xlu0 %429
        %431 = vset.pattern.permute.xlu0 0
        %432 = vperm.xlu0 %431, %v349
        %v433 = vpop.permute.xlu0 %432
        %434 = vset.pattern.permute.xlu0 0
        %435 = vperm.xlu0 %434, %v350
        %v436 = vpop.permute.xlu0 %435
        %437 = vset.pattern.permute.xlu0 0
        %438 = vperm.xlu0 %437, %v351
        %v439 = vpop.permute.xlu0 %438
        %440 = vset.pattern.permute.xlu0 0
        %441 = vperm.xlu0 %440, %v352
        %v442 = vpop.permute.xlu0 %441
        %443 = vset.pattern.permute.xlu0 0
        %444 = vperm.xlu0 %443, %v353
        %v445 = vpop.permute.xlu0 %444
        %446 = vset.pattern.permute.xlu0 0
        %447 = vperm.xlu0 %446, %v354
        %v448 = vpop.permute.xlu0 %447
        %449 = vset.pattern.permute.xlu0 0
        %450 = vperm.xlu0 %449, %v355
        %v451 = vpop.permute.xlu0 %450
        %452 = vset.pattern.permute.xlu0 0
        %453 = vperm.xlu0 %452, %v356
        %v454 = vpop.permute.xlu0 %453
        %vm455 = vcmp.eq.s32.totalorder %v361, %v358
        %vm456 = vcmp.eq.s32.totalorder %v364, %v358
        %vm457 = vcmp.eq.s32.totalorder %v367, %v358
        %vm458 = vcmp.eq.s32.totalorder %v370, %v358
        %vm459 = vcmp.eq.s32.totalorder %v373, %v358
        %vm460 = vcmp.eq.s32.totalorder %v376, %v358
        %vm461 = vcmp.eq.s32.totalorder %v379, %v358
        %vm462 = vcmp.eq.s32.totalorder %v382, %v358
        %vm463 = vcmp.eq.s32.totalorder %v385, %v358
        %vm464 = vcmp.eq.s32.totalorder %v388, %v358
        %vm465 = vcmp.eq.s32.totalorder %v391, %v358
        %vm466 = vcmp.eq.s32.totalorder %v394, %v358
        %vm467 = vcmp.eq.s32.totalorder %v397, %v358
        %vm468 = vcmp.eq.s32.totalorder %v400, %v358
        %vm469 = vcmp.eq.s32.totalorder %v403, %v358
        %vm470 = vcmp.eq.s32.totalorder %v406, %v358
        %vm471 = vcmp.eq.s32.totalorder %v409, %v358
        %vm472 = vcmp.eq.s32.totalorder %v412, %v358
        %vm473 = vcmp.eq.s32.totalorder %v415, %v358
        %vm474 = vcmp.eq.s32.totalorder %v418, %v358
        %vm475 = vcmp.eq.s32.totalorder %v421, %v358
        %vm476 = vcmp.eq.s32.totalorder %v424, %v358
        %vm477 = vcmp.eq.s32.totalorder %v427, %v358
        %vm478 = vcmp.eq.s32.totalorder %v430, %v358
        %vm479 = vcmp.eq.s32.totalorder %v433, %v358
        %vm480 = vcmp.eq.s32.totalorder %v436, %v358
        %vm481 = vcmp.eq.s32.totalorder %v439, %v358
        %vm482 = vcmp.eq.s32.totalorder %v442, %v358
        %vm483 = vcmp.eq.s32.totalorder %v445, %v358
        %vm484 = vcmp.eq.s32.totalorder %v448, %v358
        %vm485 = vcmp.eq.s32.totalorder %v451, %v358
        %vm486 = vcmp.eq.s32.totalorder %v454, %v358
        %v487 = vsel %vm455, 1, 0
        %v488 = vsel %vm456, 1, 0
        %v489 = vsel %vm457, 1, 0
        %v490 = vsel %vm458, 1, 0
        %v491 = vsel %vm459, 1, 0
        %v492 = vsel %vm460, 1, 0
        %v493 = vsel %vm461, 1, 0
        %v494 = vsel %vm462, 1, 0
        %v495 = vsel %vm463, 1, 0
        %v496 = vsel %vm464, 1, 0
        %v497 = vsel %vm465, 1, 0
        %v498 = vsel %vm466, 1, 0
        %v499 = vsel %vm467, 1, 0
        %v500 = vsel %vm468, 1, 0
        %v501 = vsel %vm469, 1, 0
        %v502 = vsel %vm470, 1, 0
        %v503 = vsel %vm471, 1, 0
        %v504 = vsel %vm472, 1, 0
        %v505 = vsel %vm473, 1, 0
        %v506 = vsel %vm474, 1, 0
        %v507 = vsel %vm475, 1, 0
        %v508 = vsel %vm476, 1, 0
        %v509 = vsel %vm477, 1, 0
        %v510 = vsel %vm478, 1, 0
        %v511 = vsel %vm479, 1, 0
        %v512 = vsel %vm480, 1, 0
        %v513 = vsel %vm481, 1, 0
        %v514 = vsel %vm482, 1, 0
        %v515 = vsel %vm483, 1, 0
        %v516 = vsel %vm484, 1, 0
        %v517 = vsel %vm485, 1, 0
        %v518 = vsel %vm486, 1, 0
        %v519 = vcvt.s32.f32 %v487
        %v520 = vcvt.s32.f32 %v488
        %v521 = vcvt.s32.f32 %v489
        %v522 = vcvt.s32.f32 %v490
        %v523 = vcvt.s32.f32 %v491
        %v524 = vcvt.s32.f32 %v492
        %v525 = vcvt.s32.f32 %v493
        %v526 = vcvt.s32.f32 %v494
        %v527 = vcvt.s32.f32 %v495
        %v528 = vcvt.s32.f32 %v496
        %v529 = vcvt.s32.f32 %v497
        %v530 = vcvt.s32.f32 %v498
        %v531 = vcvt.s32.f32 %v499
        %v532 = vcvt.s32.f32 %v500
        %v533 = vcvt.s32.f32 %v501
        %v534 = vcvt.s32.f32 %v502
        %v535 = vcvt.s32.f32 %v503
        %v536 = vcvt.s32.f32 %v504
        %v537 = vcvt.s32.f32 %v505
        %v538 = vcvt.s32.f32 %v506
        %v539 = vcvt.s32.f32 %v507
        %v540 = vcvt.s32.f32 %v508
        %v541 = vcvt.s32.f32 %v509
        %v542 = vcvt.s32.f32 %v510
        %v543 = vcvt.s32.f32 %v511
        %v544 = vcvt.s32.f32 %v512
        %v545 = vcvt.s32.f32 %v513
        %v546 = vcvt.s32.f32 %v514
        %v547 = vcvt.s32.f32 %v515
        %v548 = vcvt.s32.f32 %v516
        %v549 = vcvt.s32.f32 %v517
        %v550 = vcvt.s32.f32 %v518
        %v551 = vld [vmem:[%s1] sm:$0xff]
        %v552 = vld [vmem:[%s1 + $0x8] sm:$0xff]
        %v553 = vld [vmem:[%s1 + $0x10] sm:$0xff]
        %v554 = vld [vmem:[%s1 + $0x18] sm:$0xff]
        %v555 = vld [vmem:[%s1 + $0x20] sm:$0xff]
        %v556 = vld [vmem:[%s1 + $0x28] sm:$0xff]
        %v557 = vld [vmem:[%s1 + $0x30] sm:$0x3]
        %vm558 = vcmask 408576
        %v560 = vsel %vm558, %v519, 0
        %v563 = vsel %vm558, %v520, 0
        %v566 = vsel %vm558, %v521, 0
        %v569 = vsel %vm558, %v522, 0
        %v572 = vsel %vm558, %v523, 0
        %v575 = vsel %vm558, %v524, 0
        %v578 = vsel %vm558, %v525, 0
        %v581 = vsel %vm558, %v526, 0
        %v584 = vsel %vm558, %v527, 0
        %v587 = vsel %vm558, %v528, 0
        %v590 = vsel %vm558, %v529, 0
        %v593 = vsel %vm558, %v530, 0
        %v596 = vsel %vm558, %v531, 0
        %v599 = vsel %vm558, %v532, 0
        %v602 = vsel %vm558, %v533, 0
        %v605 = vsel %vm558, %v534, 0
        %v608 = vsel %vm558, %v535, 0
        %v611 = vsel %vm558, %v536, 0
        %v614 = vsel %vm558, %v537, 0
        %v617 = vsel %vm558, %v538, 0
        %v620 = vsel %vm558, %v539, 0
        %v623 = vsel %vm558, %v540, 0
        %v626 = vsel %vm558, %v541, 0
        %v629 = vsel %vm558, %v542, 0
        %v632 = vsel %vm558, %v543, 0
        %v635 = vsel %vm558, %v544, 0
        %v638 = vsel %vm558, %v545, 0
        %v641 = vsel %vm558, %v546, 0
        %v644 = vsel %vm558, %v547, 0
        %v647 = vsel %vm558, %v548, 0
        %v650 = vsel %vm558, %v549, 0
        %v653 = vsel %vm558, %v550, 0
        %vm655 = vcmask 1041408
        %v657 = vsel %vm655, %v557, 0
        %659 = vmatprep.subr.mxu0 0.0
        %660 = vmatpush1.msra.mxu0 %v551
        %661 = vmatprep.subr.mxu0 0.0
        %662 = vmatpush1.msra.mxu0 %v552
        %663 = vmatprep.subr.mxu0 0.0
        %664 = vmatpush1.msra.mxu0 %v553
        %665 = vmatprep.subr.mxu0 0.0
        %666 = vmatpush1.msra.mxu0 %v554
        %667 = vmatprep.subr.mxu0 0.0
        %668 = vmatpush1.msra.mxu0 %v555
        %669 = vmatprep.subr.mxu0 0.0
        %670 = vmatpush1.msra.mxu0 %v556
        %671 = vmatprep.subr.mxu0 0.0
        %672 = vmatpush1.msra.mxu0 %v657
        %673 = vmatprep.subr.mxu0 0.0
        %674 = vmatpush1.msra.mxu0 0.0
        %675 = vmatprep.subr.mxu0 0.0
        %676 = vmatpush1.msra.mxu0 0.0
        %677 = vmatprep.subr.mxu0 0.0
        %678 = vmatpush1.msra.mxu0 0.0
        %679 = vmatprep.subr.mxu0 0.0
        %680 = vmatpush1.msra.mxu0 0.0
        %681 = vmatprep.subr.mxu0 0.0
        %682 = vmatpush1.msra.mxu0 0.0
        %683 = vmatprep.subr.mxu0 0.0
        %684 = vmatpush1.msra.mxu0 0.0
        %685 = vmatprep.subr.mxu0 0.0
        %686 = vmatpush1.msra.mxu0 0.0
        %687 = vmatprep.subr.mxu0 0.0
        %688 = vmatpush1.msra.mxu0 0.0
        %689 = vmatprep.subr.mxu0 0.0
        %690 = vmatpush1.msra.mxu0 0.0
        %691 = vmatprep.subr.mxu0 0.0
        %692 = vmatpush1.msra.mxu0 0.0
        %693 = vmatprep.subr.mxu0 0.0
        %694 = vmatpush1.msra.mxu0 0.0
        %695 = vmatprep.subr.mxu0 0.0
        %696 = vmatpush1.msra.mxu0 0.0
        %697 = vmatprep.subr.mxu0 0.0
        %698 = vmatpush1.msra.mxu0 0.0
        %699 = vmatprep.subr.mxu0 0.0
        %700 = vmatpush1.msra.mxu0 0.0
        %701 = vmatprep.subr.mxu0 0.0
        %702 = vmatpush1.msra.mxu0 0.0
        %703 = vmatprep.subr.mxu0 0.0
        %704 = vmatpush1.msra.mxu0 0.0
        %705 = vmatprep.subr.mxu0 0.0
        %706 = vmatpush1.msra.mxu0 0.0
        %707 = vmatprep.subr.mxu0 0.0
        %708 = vmatpush1.msra.mxu0 0.0
        %709 = vmatprep.subr.mxu0 0.0
        %710 = vmatpush1.msra.mxu0 0.0
        %711 = vmatprep.subr.mxu0 0.0
        %712 = vmatpush1.msra.mxu0 0.0
        %713 = vmatprep.subr.mxu0 0.0
        %714 = vmatpush1.msra.mxu0 0.0
        %715 = vmatprep.subr.mxu0 0.0
        %716 = vmatpush1.msra.mxu0 0.0
        %717 = vmatprep.subr.mxu0 0.0
        %718 = vmatpush1.msra.mxu0 0.0
        %719 = vmatprep.subr.mxu0 0.0
        %720 = vmatpush1.msra.mxu0 0.0
        %721 = vmatprep.subr.mxu0 0.0
        %722 = vmatpush1.msra.mxu0 0.0
        %723 = vmatprep.mubr.f32.mxu0 0.0
        %724 = vmatmul.mubr.f32.gmra.mrb[0].mxu0 %v560
        %v725 = vpop.f32.mrb[0].mxu0
        %v726 = vadd.f32 0.0, %v725
        %v727 = vpop.f32.mrb[0].mxu0
        %728 = vmatprep.mubr.f32.mxu0 0.0
        %729 = vmatmul.mubr.f32.gmra.mrb[0].mxu0 %v563
        %v730 = vpop.f32.mrb[0].mxu0
        %v731 = vadd.f32 0.0, %v730
        %v732 = vpop.f32.mrb[0].mxu0
        %733 = vmatprep.mubr.f32.mxu0 0.0
        %734 = vmatmul.mubr.f32.gmra.mrb[0].mxu0 %v566
        %v735 = vpop.f32.mrb[0].mxu0
        %v736 = vadd.f32 0.0, %v735
        %v737 = vpop.f32.mrb[0].mxu0
        %738 = vmatprep.mubr.f32.mxu0 0.0
        %739 = vmatmul.mubr.f32.gmra.mrb[0].mxu0 %v569
        %v740 = vpop.f32.mrb[0].mxu0
        %v741 = vadd.f32 0.0, %v740
        %v742 = vpop.f32.mrb[0].mxu0
        %743 = vmatprep.mubr.f32.mxu0 0.0
        %744 = vmatmul.mubr.f32.gmra.mrb[0].mxu0 %v572
        %v745 = vpop.f32.mrb[0].mxu0
        %v746 = vadd.f32 0.0, %v745
        %v747 = vpop.f32.mrb[0].mxu0
        %748 = vmatprep.mubr.f32.mxu0 0.0
        %749 = vmatmul.mubr.f32.gmra.mrb[0].mxu0 %v575
        %v750 = vpop.f32.mrb[0].mxu0
        %v751 = vadd.f32 0.0, %v750
        %v752 = vpop.f32.mrb[0].mxu0
        %753 = vmatprep.mubr.f32.mxu0 0.0
        %754 = vmatmul.mubr.f32.gmra.mrb[0].mxu0 %v578
        %v755 = vpop.f32.mrb[0].mxu0
        %v756 = vadd.f32 0.0, %v755
        %v757 = vpop.f32.mrb[0].mxu0
        %758 = vmatprep.mubr.f32.mxu0 0.0
        %759 = vmatmul.mubr.f32.gmra.mrb[0].mxu0 %v581
        %v760 = vpop.f32.mrb[0].mxu0
        %v761 = vadd.f32 0.0, %v760
        %v762 = vpop.f32.mrb[0].mxu0
        %763 = vmatprep.mubr.f32.mxu0 0.0
        %764 = vmatmul.mubr.f32.gmra.mrb[0].mxu0 %v584
        %v765 = vpop.f32.mrb[0].mxu0
        %v766 = vadd.f32 0.0, %v765
        %v767 = vpop.f32.mrb[0].mxu0
        %768 = vmatprep.mubr.f32.mxu0 0.0
        %769 = vmatmul.mubr.f32.gmra.mrb[0].mxu0 %v587
        %v770 = vpop.f32.mrb[0].mxu0
        %v771 = vadd.f32 0.0, %v770
        %v772 = vpop.f32.mrb[0].mxu0
        %773 = vmatprep.mubr.f32.mxu0 0.0
        %774 = vmatmul.mubr.f32.gmra.mrb[0].mxu0 %v590
        %v775 = vpop.f32.mrb[0].mxu0
        %v776 = vadd.f32 0.0, %v775
        %v777 = vpop.f32.mrb[0].mxu0
        %778 = vmatprep.mubr.f32.mxu0 0.0
        %779 = vmatmul.mubr.f32.gmra.mrb[0].mxu0 %v593
        %v780 = vpop.f32.mrb[0].mxu0
        %v781 = vadd.f32 0.0, %v780
        %v782 = vpop.f32.mrb[0].mxu0
        %783 = vmatprep.mubr.f32.mxu0 0.0
        %784 = vmatmul.mubr.f32.gmra.mrb[0].mxu0 %v596
        %v785 = vpop.f32.mrb[0].mxu0
        %v786 = vadd.f32 0.0, %v785
        %v787 = vpop.f32.mrb[0].mxu0
        %788 = vmatprep.mubr.f32.mxu0 0.0
        %789 = vmatmul.mubr.f32.gmra.mrb[0].mxu0 %v599
        %v790 = vpop.f32.mrb[0].mxu0
        %v791 = vadd.f32 0.0, %v790
        %v792 = vpop.f32.mrb[0].mxu0
        %793 = vmatprep.mubr.f32.mxu0 0.0
        %794 = vmatmul.mubr.f32.gmra.mrb[0].mxu0 %v602
        %v795 = vpop.f32.mrb[0].mxu0
        %v796 = vadd.f32 0.0, %v795
        %v797 = vpop.f32.mrb[0].mxu0
        %798 = vmatprep.mubr.f32.mxu0 0.0
        %799 = vmatmul.mubr.f32.gmra.mrb[0].mxu0 %v605
        %v800 = vpop.f32.mrb[0].mxu0
        %v801 = vadd.f32 0.0, %v800
        %v802 = vpop.f32.mrb[0].mxu0
        %803 = vmatprep.mubr.f32.mxu0 0.0
        %804 = vmatmul.mubr.f32.gmra.mrb[0].mxu0 %v608
        %v805 = vpop.f32.mrb[0].mxu0
        %v806 = vadd.f32 0.0, %v805
        %v807 = vpop.f32.mrb[0].mxu0
        %808 = vmatprep.mubr.f32.mxu0 0.0
        %809 = vmatmul.mubr.f32.gmra.mrb[0].mxu0 %v611
        %v810 = vpop.f32.mrb[0].mxu0
        %v811 = vadd.f32 0.0, %v810
        %v812 = vpop.f32.mrb[0].mxu0
        %813 = vmatprep.mubr.f32.mxu0 0.0
        %814 = vmatmul.mubr.f32.gmra.mrb[0].mxu0 %v614
        %v815 = vpop.f32.mrb[0].mxu0
        %v816 = vadd.f32 0.0, %v815
        %v817 = vpop.f32.mrb[0].mxu0
        %818 = vmatprep.mubr.f32.mxu0 0.0
        %819 = vmatmul.mubr.f32.gmra.mrb[0].mxu0 %v617
        %v820 = vpop.f32.mrb[0].mxu0
        %v821 = vadd.f32 0.0, %v820
        %v822 = vpop.f32.mrb[0].mxu0
        %823 = vmatprep.mubr.f32.mxu0 0.0
        %824 = vmatmul.mubr.f32.gmra.mrb[0].mxu0 %v620
        %v825 = vpop.f32.mrb[0].mxu0
        %v826 = vadd.f32 0.0, %v825
        %v827 = vpop.f32.mrb[0].mxu0
        %828 = vmatprep.mubr.f32.mxu0 0.0
        %829 = vmatmul.mubr.f32.gmra.mrb[0].mxu0 %v623
        %v830 = vpop.f32.mrb[0].mxu0
        %v831 = vadd.f32 0.0, %v830
        %v832 = vpop.f32.mrb[0].mxu0
        %833 = vmatprep.mubr.f32.mxu0 0.0
        %834 = vmatmul.mubr.f32.gmra.mrb[0].mxu0 %v626
        %v835 = vpop.f32.mrb[0].mxu0
        %v836 = vadd.f32 0.0, %v835
        %v837 = vpop.f32.mrb[0].mxu0
        %838 = vmatprep.mubr.f32.mxu0 0.0
        %839 = vmatmul.mubr.f32.gmra.mrb[0].mxu0 %v629
        %v840 = vpop.f32.mrb[0].mxu0
        %v841 = vadd.f32 0.0, %v840
        %v842 = vpop.f32.mrb[0].mxu0
        %843 = vmatprep.mubr.f32.mxu0 0.0
        %844 = vmatmul.mubr.f32.gmra.mrb[0].mxu0 %v632
        %v845 = vpop.f32.mrb[0].mxu0
        %v846 = vadd.f32 0.0, %v845
        %v847 = vpop.f32.mrb[0].mxu0
        %848 = vmatprep.mubr.f32.mxu0 0.0
        %849 = vmatmul.mubr.f32.gmra.mrb[0].mxu0 %v635
        %v850 = vpop.f32.mrb[0].mxu0
        %v851 = vadd.f32 0.0, %v850
        %v852 = vpop.f32.mrb[0].mxu0
        %853 = vmatprep.mubr.f32.mxu0 0.0
        %854 = vmatmul.mubr.f32.gmra.mrb[0].mxu0 %v638
        %v855 = vpop.f32.mrb[0].mxu0
        %v856 = vadd.f32 0.0, %v855
        %v857 = vpop.f32.mrb[0].mxu0
        %858 = vmatprep.mubr.f32.mxu0 0.0
        %859 = vmatmul.mubr.f32.gmra.mrb[0].mxu0 %v641
        %v860 = vpop.f32.mrb[0].mxu0
        %v861 = vadd.f32 0.0, %v860
        %v862 = vpop.f32.mrb[0].mxu0
        %863 = vmatprep.mubr.f32.mxu0 0.0
        %864 = vmatmul.mubr.f32.gmra.mrb[0].mxu0 %v644
        %v865 = vpop.f32.mrb[0].mxu0
        %v866 = vadd.f32 0.0, %v865
        %v867 = vpop.f32.mrb[0].mxu0
        %868 = vmatprep.mubr.f32.mxu0 0.0
        %869 = vmatmul.mubr.f32.gmra.mrb[0].mxu0 %v647
        %v870 = vpop.f32.mrb[0].mxu0
        %v871 = vadd.f32 0.0, %v870
        %v872 = vpop.f32.mrb[0].mxu0
        %873 = vmatprep.mubr.f32.mxu0 0.0
        %874 = vmatmul.mubr.f32.gmra.mrb[0].mxu0 %v650
        %v875 = vpop.f32.mrb[0].mxu0
        %v876 = vadd.f32 0.0, %v875
        %v877 = vpop.f32.mrb[0].mxu0
        %878 = vmatprep.mubr.f32.mxu0 0.0
        %879 = vmatmul.mubr.f32.gmra.mrb[0].mxu0 %v653
        %v880 = vpop.f32.mrb[0].mxu0
        %v881 = vadd.f32 0.0, %v880
        %v882 = vpop.f32.mrb[0].mxu0
        %883 = vdwg.mxu0
        %v884 = vld [vmem:[#allocation2] sm:$0xff]
        %v885 = vld [vmem:[#allocation2 + $0x8] sm:$0xff]
        %v886 = vld [vmem:[#allocation2 + $0x10] sm:$0xff]
        %v887 = vld [vmem:[#allocation2 + $0x18] sm:$0xff]
        %v888 = vld [vmem:[#allocation2 + $0x20] sm:$0xff]
        %v889 = vld [vmem:[#allocation2 + $0x28] sm:$0xff]
        %v890 = vld [vmem:[#allocation2 + $0x30] sm:$0xff]
        %v891 = vld [vmem:[#allocation2 + $0x38] sm:$0xff]
        %v892 = vld [vmem:[#allocation2 + $0x40] sm:$0xff]
        %v893 = vld [vmem:[#allocation2 + $0x48] sm:$0xff]
        %v894 = vld [vmem:[#allocation2 + $0x50] sm:$0xff]
        %v895 = vld [vmem:[#allocation2 + $0x58] sm:$0xff]
        %v896 = vld [vmem:[#allocation2 + $0x60] sm:$0xff]
        %v897 = vld [vmem:[#allocation2 + $0x68] sm:$0xff]
        %v898 = vld [vmem:[#allocation2 + $0x70] sm:$0xff]
        %v899 = vld [vmem:[#allocation2 + $0x78] sm:$0xff]
        %v900 = vld [vmem:[#allocation2 + $0x80] sm:$0xff]
        %v901 = vld [vmem:[#allocation2 + $0x88] sm:$0xff]
        %v902 = vld [vmem:[#allocation2 + $0x90] sm:$0xff]
        %v903 = vld [vmem:[#allocation2 + $0x98] sm:$0xff]
        %vm904 = vcmask 261120
        %v906 = vsel %vm904, %v726, 0
        %v909 = vsel %vm904, %v731, 0
        %v912 = vsel %vm904, %v736, 0
        %v915 = vsel %vm904, %v741, 0
        %v918 = vsel %vm904, %v746, 0
        %v921 = vsel %vm904, %v751, 0
        %v924 = vsel %vm904, %v756, 0
        %v927 = vsel %vm904, %v761, 0
        %v930 = vsel %vm904, %v766, 0
        %v933 = vsel %vm904, %v771, 0
        %v936 = vsel %vm904, %v776, 0
        %v939 = vsel %vm904, %v781, 0
        %v942 = vsel %vm904, %v786, 0
        %v945 = vsel %vm904, %v791, 0
        %v948 = vsel %vm904, %v796, 0
        %v951 = vsel %vm904, %v801, 0
        %v954 = vsel %vm904, %v806, 0
        %v957 = vsel %vm904, %v811, 0
        %v960 = vsel %vm904, %v816, 0
        %v963 = vsel %vm904, %v821, 0
        %v966 = vsel %vm904, %v826, 0
        %v969 = vsel %vm904, %v831, 0
        %v972 = vsel %vm904, %v836, 0
        %v975 = vsel %vm904, %v841, 0
        %v978 = vsel %vm904, %v846, 0
        %v981 = vsel %vm904, %v851, 0
        %v984 = vsel %vm904, %v856, 0
        %v987 = vsel %vm904, %v861, 0
        %v990 = vsel %vm904, %v866, 0
        %v993 = vsel %vm904, %v871, 0
        %v996 = vsel %vm904, %v876, 0
        %v999 = vsel %vm904, %v881, 0
        %1001 = vmatprep.subr.mxu0 %v885
        %1002 = vmatpush1.msra.mxu0 %v884
        %1003 = vmatprep.subr.mxu0 %v890
        %1004 = vmatpush1.msra.mxu0 %v889
        %1005 = vmatprep.subr.mxu0 %v895
        %1006 = vmatpush1.msra.mxu0 %v894
        %1007 = vmatprep.subr.mxu0 %v900
        %1008 = vmatpush1.msra.mxu0 %v899
        %1009 = vmatprep.subr.mxu0 0.0
        %1010 = vmatpush1.msra.mxu0 0.0
        %1011 = vmatprep.subr.mxu0 0.0
        %1012 = vmatpush1.msra.mxu0 0.0
        %1013 = vmatprep.subr.mxu0 0.0
        %1014 = vmatpush1.msra.mxu0 0.0
        %1015 = vmatprep.subr.mxu0 0.0
        %1016 = vmatpush1.msra.mxu0 0.0
        %1017 = vmatprep.subr.mxu0 0.0
        %1018 = vmatpush1.msra.mxu0 0.0
        %1019 = vmatprep.subr.mxu0 0.0
        %1020 = vmatpush1.msra.mxu0 0.0
        %1021 = vmatprep.subr.mxu0 0.0
        %1022 = vmatpush1.msra.mxu0 0.0
        %1023 = vmatprep.subr.mxu0 0.0
        %1024 = vmatpush1.msra.mxu0 0.0
        %1025 = vmatprep.subr.mxu0 0.0
        %1026 = vmatpush1.msra.mxu0 0.0
        %1027 = vmatprep.subr.mxu0 0.0
        %1028 = vmatpush1.msra.mxu0 0.0
        %1029 = vmatprep.subr.mxu0 0.0
        %1030 = vmatpush1.msra.mxu0 0.0
        %1031 = vmatprep.subr.mxu0 0.0
        %1032 = vmatpush1.msra.mxu0 0.0
        %1033 = vmatprep.subr.mxu0 0.0
        %1034 = vmatpush1.msra.mxu0 0.0
        %1035 = vmatprep.subr.mxu0 0.0
        %1036 = vmatpush1.msra.mxu0 0.0
        %1037 = vmatprep.subr.mxu0 0.0
        %1038 = vmatpush1.msra.mxu0 0.0
        %1039 = vmatprep.subr.mxu0 0.0
        %1040 = vmatpush1.msra.mxu0 0.0
        %1041 = vmatprep.subr.mxu0 0.0
        %1042 = vmatpush1.msra.mxu0 0.0
        %1043 = vmatprep.subr.mxu0 0.0
        %1044 = vmatpush1.msra.mxu0 0.0
        %1045 = vmatprep.subr.mxu0 0.0
        %1046 = vmatpush1.msra.mxu0 0.0
        %1047 = vmatprep.subr.mxu0 0.0
        %1048 = vmatpush1.msra.mxu0 0.0
        %1049 = vmatprep.subr.mxu0 0.0
        %1050 = vmatpush1.msra.mxu0 0.0
        %1051 = vmatprep.subr.mxu0 0.0
        %1052 = vmatpush1.msra.mxu0 0.0
        %1053 = vmatprep.subr.mxu0 0.0
        %1054 = vmatpush1.msra.mxu0 0.0
        %1055 = vmatprep.subr.mxu0 0.0
        %1056 = vmatpush1.msra.mxu0 0.0
        %1057 = vmatprep.subr.mxu0 0.0
        %1058 = vmatpush1.msra.mxu0 0.0
        %1059 = vmatprep.subr.mxu0 0.0
        %1060 = vmatpush1.msra.mxu0 0.0
        %1061 = vmatprep.subr.mxu0 0.0
        %1062 = vmatpush1.msra.mxu0 0.0
        %1063 = vmatprep.subr.mxu0 0.0
        %1064 = vmatpush1.msra.mxu0 0.0
        %1065 = vmatprep.mubr.f32.mxu0 0.0
        %1066 = vmatmul.mubr.f32.gmra.mrb[0].mxu0 %v906
        %v1067 = vpop.f32.mrb[0].mxu0
        %v1068 = vadd.f32 0.0, %v1067
        %v1069 = vpop.f32.mrb[0].mxu0
        %v1070 = vadd.f32 0.0, %v1069
        %1071 = vmatprep.mubr.f32.mxu0 0.0
        %1072 = vmatmul.mubr.f32.gmra.mrb[0].mxu0 %v909
        %v1073 = vpop.f32.mrb[0].mxu0
        %v1074 = vadd.f32 0.0, %v1073
        %v1075 = vpop.f32.mrb[0].mxu0
        %v1076 = vadd.f32 0.0, %v1075
        %1077 = vmatprep.mubr.f32.mxu0 0.0
        %1078 = vmatmul.mubr.f32.gmra.mrb[0].mxu0 %v912
        %v1079 = vpop.f32.mrb[0].mxu0
        %v1080 = vadd.f32 0.0, %v1079
        %v1081 = vpop.f32.mrb[0].mxu0
        %v1082 = vadd.f32 0.0, %v1081
        %1083 = vmatprep.mubr.f32.mxu0 0.0
        %1084 = vmatmul.mubr.f32.gmra.mrb[0].mxu0 %v915
        %v1085 = vpop.f32.mrb[0].mxu0
        %v1086 = vadd.f32 0.0, %v1085
        %v1087 = vpop.f32.mrb[0].mxu0
        %v1088 = vadd.f32 0.0, %v1087
        %1089 = vmatprep.mubr.f32.mxu0 0.0
        %1090 = vmatmul.mubr.f32.gmra.mrb[0].mxu0 %v918
        %v1091 = vpop.f32.mrb[0].mxu0
        %v1092 = vadd.f32 0.0, %v1091
        %v1093 = vpop.f32.mrb[0].mxu0
        %v1094 = vadd.f32 0.0, %v1093
        %1095 = vmatprep.mubr.f32.mxu0 0.0
        %1096 = vmatmul.mubr.f32.gmra.mrb[0].mxu0 %v921
        %v1097 = vpop.f32.mrb[0].mxu0
        %v1098 = vadd.f32 0.0, %v1097
        %v1099 = vpop.f32.mrb[0].mxu0
        %v1100 = vadd.f32 0.0, %v1099
        %1101 = vmatprep.mubr.f32.mxu0 0.0
        %1102 = vmatmul.mubr.f32.gmra.mrb[0].mxu0 %v924
        %v1103 = vpop.f32.mrb[0].mxu0
        %v1104 = vadd.f32 0.0, %v1103
        %v1105 = vpop.f32.mrb[0].mxu0
        %v1106 = vadd.f32 0.0, %v1105
        %1107 = vmatprep.mubr.f32.mxu0 0.0
        %1108 = vmatmul.mubr.f32.gmra.mrb[0].mxu0 %v927
        %v1109 = vpop.f32.mrb[0].mxu0
        %v1110 = vadd.f32 0.0, %v1109
        %v1111 = vpop.f32.mrb[0].mxu0
        %v1112 = vadd.f32 0.0, %v1111
        %1113 = vmatprep.mubr.f32.mxu0 0.0
        %1114 = vmatmul.mubr.f32.gmra.mrb[0].mxu0 %v930
        %v1115 = vpop.f32.mrb[0].mxu0
        %v1116 = vadd.f32 0.0, %v1115
        %v1117 = vpop.f32.mrb[0].mxu0
        %v1118 = vadd.f32 0.0, %v1117
        %1119 = vmatprep.mubr.f32.mxu0 0.0
        %1120 = vmatmul.mubr.f32.gmra.mrb[0].mxu0 %v933
        %v1121 = vpop.f32.mrb[0].mxu0
        %v1122 = vadd.f32 0.0, %v1121
        %v1123 = vpop.f32.mrb[0].mxu0
        %v1124 = vadd.f32 0.0, %v1123
        %1125 = vmatprep.mubr.f32.mxu0 0.0
        %1126 = vmatmul.mubr.f32.gmra.mrb[0].mxu0 %v936
        %v1127 = vpop.f32.mrb[0].mxu0
        %v1128 = vadd.f32 0.0, %v1127
        %v1129 = vpop.f32.mrb[0].mxu0
        %v1130 = vadd.f32 0.0, %v1129
        %1131 = vmatprep.mubr.f32.mxu0 0.0
        %1132 = vmatmul.mubr.f32.gmra.mrb[0].mxu0 %v939
        %v1133 = vpop.f32.mrb[0].mxu0
        %v1134 = vadd.f32 0.0, %v1133
        %v1135 = vpop.f32.mrb[0].mxu0
        %v1136 = vadd.f32 0.0, %v1135
        %1137 = vmatprep.mubr.f32.mxu0 0.0
        %1138 = vmatmul.mubr.f32.gmra.mrb[0].mxu0 %v942
        %v1139 = vpop.f32.mrb[0].mxu0
        %v1140 = vadd.f32 0.0, %v1139
        %v1141 = vpop.f32.mrb[0].mxu0
        %v1142 = vadd.f32 0.0, %v1141
        %1143 = vmatprep.mubr.f32.mxu0 0.0
        %1144 = vmatmul.mubr.f32.gmra.mrb[0].mxu0 %v945
        %v1145 = vpop.f32.mrb[0].mxu0
        %v1146 = vadd.f32 0.0, %v1145
        %v1147 = vpop.f32.mrb[0].mxu0
        %v1148 = vadd.f32 0.0, %v1147
        %1149 = vmatprep.mubr.f32.mxu0 0.0
        %1150 = vmatmul.mubr.f32.gmra.mrb[0].mxu0 %v948
        %v1151 = vpop.f32.mrb[0].mxu0
        %v1152 = vadd.f32 0.0, %v1151
        %v1153 = vpop.f32.mrb[0].mxu0
        %v1154 = vadd.f32 0.0, %v1153
        %1155 = vmatprep.mubr.f32.mxu0 0.0
        %1156 = vmatmul.mubr.f32.gmra.mrb[0].mxu0 %v951
        %v1157 = vpop.f32.mrb[0].mxu0
        %v1158 = vadd.f32 0.0, %v1157
        %v1159 = vpop.f32.mrb[0].mxu0
        %v1160 = vadd.f32 0.0, %v1159
        %1161 = vmatprep.mubr.f32.mxu0 0.0
        %1162 = vmatmul.mubr.f32.gmra.mrb[0].mxu0 %v954
        %v1163 = vpop.f32.mrb[0].mxu0
        %v1164 = vadd.f32 0.0, %v1163
        %v1165 = vpop.f32.mrb[0].mxu0
        %v1166 = vadd.f32 0.0, %v1165
        %1167 = vmatprep.mubr.f32.mxu0 0.0
        %1168 = vmatmul.mubr.f32.gmra.mrb[0].mxu0 %v957
        %v1169 = vpop.f32.mrb[0].mxu0
        %v1170 = vadd.f32 0.0, %v1169
        %v1171 = vpop.f32.mrb[0].mxu0
        %v1172 = vadd.f32 0.0, %v1171
        %1173 = vmatprep.mubr.f32.mxu0 0.0
        %1174 = vmatmul.mubr.f32.gmra.mrb[0].mxu0 %v960
        %v1175 = vpop.f32.mrb[0].mxu0
        %v1176 = vadd.f32 0.0, %v1175
        %v1177 = vpop.f32.mrb[0].mxu0
        %v1178 = vadd.f32 0.0, %v1177
        %1179 = vmatprep.mubr.f32.mxu0 0.0
        %1180 = vmatmul.mubr.f32.gmra.mrb[0].mxu0 %v963
        %v1181 = vpop.f32.mrb[0].mxu0
        %v1182 = vadd.f32 0.0, %v1181
        %v1183 = vpop.f32.mrb[0].mxu0
        %v1184 = vadd.f32 0.0, %v1183
        %1185 = vmatprep.mubr.f32.mxu0 0.0
        %1186 = vmatmul.mubr.f32.gmra.mrb[0].mxu0 %v966
        %v1187 = vpop.f32.mrb[0].mxu0
        %v1188 = vadd.f32 0.0, %v1187
        %v1189 = vpop.f32.mrb[0].mxu0
        %v1190 = vadd.f32 0.0, %v1189
        %1191 = vmatprep.mubr.f32.mxu0 0.0
        %1192 = vmatmul.mubr.f32.gmra.mrb[0].mxu0 %v969
        %v1193 = vpop.f32.mrb[0].mxu0
        %v1194 = vadd.f32 0.0, %v1193
        %v1195 = vpop.f32.mrb[0].mxu0
        %v1196 = vadd.f32 0.0, %v1195
        %1197 = vmatprep.mubr.f32.mxu0 0.0
        %1198 = vmatmul.mubr.f32.gmra.mrb[0].mxu0 %v972
        %v1199 = vpop.f32.mrb[0].mxu0
        %v1200 = vadd.f32 0.0, %v1199
        %v1201 = vpop.f32.mrb[0].mxu0
        %v1202 = vadd.f32 0.0, %v1201
        %1203 = vmatprep.mubr.f32.mxu0 0.0
        %1204 = vmatmul.mubr.f32.gmra.mrb[0].mxu0 %v975
        %v1205 = vpop.f32.mrb[0].mxu0
        %v1206 = vadd.f32 0.0, %v1205
        %v1207 = vpop.f32.mrb[0].mxu0
        %v1208 = vadd.f32 0.0, %v1207
        %1209 = vmatprep.mubr.f32.mxu0 0.0
        %1210 = vmatmul.mubr.f32.gmra.mrb[0].mxu0 %v978
        %v1211 = vpop.f32.mrb[0].mxu0
        %v1212 = vadd.f32 0.0, %v1211
        %v1213 = vpop.f32.mrb[0].mxu0
        %v1214 = vadd.f32 0.0, %v1213
        %1215 = vmatprep.mubr.f32.mxu0 0.0
        %1216 = vmatmul.mubr.f32.gmra.mrb[0].mxu0 %v981
        %v1217 = vpop.f32.mrb[0].mxu0
        %v1218 = vadd.f32 0.0, %v1217
        %v1219 = vpop.f32.mrb[0].mxu0
        %v1220 = vadd.f32 0.0, %v1219
        %1221 = vmatprep.mubr.f32.mxu0 0.0
        %1222 = vmatmul.mubr.f32.gmra.mrb[0].mxu0 %v984
        %v1223 = vpop.f32.mrb[0].mxu0
        %v1224 = vadd.f32 0.0, %v1223
        %v1225 = vpop.f32.mrb[0].mxu0
        %v1226 = vadd.f32 0.0, %v1225
        %1227 = vmatprep.mubr.f32.mxu0 0.0
        %1228 = vmatmul.mubr.f32.gmra.mrb[0].mxu0 %v987
        %v1229 = vpop.f32.mrb[0].mxu0
        %v1230 = vadd.f32 0.0, %v1229
        %v1231 = vpop.f32.mrb[0].mxu0
        %v1232 = vadd.f32 0.0, %v1231
        %1233 = vmatprep.mubr.f32.mxu0 0.0
        %1234 = vmatmul.mubr.f32.gmra.mrb[0].mxu0 %v990
        %v1235 = vpop.f32.mrb[0].mxu0
        %v1236 = vadd.f32 0.0, %v1235
        %v1237 = vpop.f32.mrb[0].mxu0
        %v1238 = vadd.f32 0.0, %v1237
        %1239 = vmatprep.mubr.f32.mxu0 0.0
        %1240 = vmatmul.mubr.f32.gmra.mrb[0].mxu0 %v993
        %v1241 = vpop.f32.mrb[0].mxu0
        %v1242 = vadd.f32 0.0, %v1241
        %v1243 = vpop.f32.mrb[0].mxu0
        %v1244 = vadd.f32 0.0, %v1243
        %1245 = vmatprep.mubr.f32.mxu0 0.0
        %1246 = vmatmul.mubr.f32.gmra.mrb[0].mxu0 %v996
        %v1247 = vpop.f32.mrb[0].mxu0
        %v1248 = vadd.f32 0.0, %v1247
        %v1249 = vpop.f32.mrb[0].mxu0
        %v1250 = vadd.f32 0.0, %v1249
        %1251 = vmatprep.mubr.f32.mxu0 0.0
        %1252 = vmatmul.mubr.f32.gmra.mrb[0].mxu0 %v999
        %v1253 = vpop.f32.mrb[0].mxu0
        %v1254 = vadd.f32 0.0, %v1253
        %v1255 = vpop.f32.mrb[0].mxu0
        %v1256 = vadd.f32 0.0, %v1255
        %1257 = vdwg.mxu0
        %1258 = vmatprep.subr.mxu0 %v887
        %1259 = vmatpush1.msra.mxu0 %v886
        %1260 = vmatprep.subr.mxu0 %v892
        %1261 = vmatpush1.msra.mxu0 %v891
        %1262 = vmatprep.subr.mxu0 %v897
        %1263 = vmatpush1.msra.mxu0 %v896
        %1264 = vmatprep.subr.mxu0 %v902
        %1265 = vmatpush1.msra.mxu0 %v901
        %1266 = vmatprep.subr.mxu0 0.0
        %1267 = vmatpush1.msra.mxu0 0.0
        %1268 = vmatprep.subr.mxu0 0.0
        %1269 = vmatpush1.msra.mxu0 0.0
        %1270 = vmatprep.subr.mxu0 0.0
        %1271 = vmatpush1.msra.mxu0 0.0
        %1272 = vmatprep.subr.mxu0 0.0
        %1273 = vmatpush1.msra.mxu0 0.0
        %1274 = vmatprep.subr.mxu0 0.0
        %1275 = vmatpush1.msra.mxu0 0.0
        %1276 = vmatprep.subr.mxu0 0.0
        %1277 = vmatpush1.msra.mxu0 0.0
        %1278 = vmatprep.subr.mxu0 0.0
        %1279 = vmatpush1.msra.mxu0 0.0
        %1280 = vmatprep.subr.mxu0 0.0
        %1281 = vmatpush1.msra.mxu0 0.0
        %1282 = vmatprep.subr.mxu0 0.0
        %1283 = vmatpush1.msra.mxu0 0.0
        %1284 = vmatprep.subr.mxu0 0.0
        %1285 = vmatpush1.msra.mxu0 0.0
        %1286 = vmatprep.subr.mxu0 0.0
        %1287 = vmatpush1.msra.mxu0 0.0
        %1288 = vmatprep.subr.mxu0 0.0
        %1289 = vmatpush1.msra.mxu0 0.0
        %1290 = vmatprep.subr.mxu0 0.0
        %1291 = vmatpush1.msra.mxu0 0.0
        %1292 = vmatprep.subr.mxu0 0.0
        %1293 = vmatpush1.msra.mxu0 0.0
        %1294 = vmatprep.subr.mxu0 0.0
        %1295 = vmatpush1.msra.mxu0 0.0
        %1296 = vmatprep.subr.mxu0 0.0
        %1297 = vmatpush1.msra.mxu0 0.0
        %1298 = vmatprep.subr.mxu0 0.0
        %1299 = vmatpush1.msra.mxu0 0.0
        %1300 = vmatprep.subr.mxu0 0.0
        %1301 = vmatpush1.msra.mxu0 0.0
        %1302 = vmatprep.subr.mxu0 0.0
        %1303 = vmatpush1.msra.mxu0 0.0
        %1304 = vmatprep.subr.mxu0 0.0
        %1305 = vmatpush1.msra.mxu0 0.0
        %1306 = vmatprep.subr.mxu0 0.0
        %1307 = vmatpush1.msra.mxu0 0.0
        %1308 = vmatprep.subr.mxu0 0.0
        %1309 = vmatpush1.msra.mxu0 0.0
        %1310 = vmatprep.subr.mxu0 0.0
        %1311 = vmatpush1.msra.mxu0 0.0
        %1312 = vmatprep.subr.mxu0 0.0
        %1313 = vmatpush1.msra.mxu0 0.0
        %1314 = vmatprep.subr.mxu0 0.0
        %1315 = vmatpush1.msra.mxu0 0.0
        %1316 = vmatprep.subr.mxu0 0.0
        %1317 = vmatpush1.msra.mxu0 0.0
        %1318 = vmatprep.subr.mxu0 0.0
        %1319 = vmatpush1.msra.mxu0 0.0
        %1320 = vmatprep.subr.mxu0 0.0
        %1321 = vmatpush1.msra.mxu0 0.0
        %1322 = vmatprep.mubr.f32.mxu0 0.0
        %1323 = vmatmul.mubr.f32.gmra.mrb[0].mxu0 %v906
        %v1324 = vpop.f32.mrb[0].mxu0
        %v1325 = vadd.f32 0.0, %v1324
        %v1326 = vpop.f32.mrb[0].mxu0
        %v1327 = vadd.f32 0.0, %v1326
        %1328 = vmatprep.mubr.f32.mxu0 0.0
        %1329 = vmatmul.mubr.f32.gmra.mrb[0].mxu0 %v909
        %v1330 = vpop.f32.mrb[0].mxu0
        %v1331 = vadd.f32 0.0, %v1330
        %v1332 = vpop.f32.mrb[0].mxu0
        %v1333 = vadd.f32 0.0, %v1332
        %1334 = vmatprep.mubr.f32.mxu0 0.0
        %1335 = vmatmul.mubr.f32.gmra.mrb[0].mxu0 %v912
        %v1336 = vpop.f32.mrb[0].mxu0
        %v1337 = vadd.f32 0.0, %v1336
        %v1338 = vpop.f32.mrb[0].mxu0
        %v1339 = vadd.f32 0.0, %v1338
        %1340 = vmatprep.mubr.f32.mxu0 0.0
        %1341 = vmatmul.mubr.f32.gmra.mrb[0].mxu0 %v915
        %v1342 = vpop.f32.mrb[0].mxu0
        %v1343 = vadd.f32 0.0, %v1342
        %v1344 = vpop.f32.mrb[0].mxu0
        %v1345 = vadd.f32 0.0, %v1344
        %1346 = vmatprep.mubr.f32.mxu0 0.0
        %1347 = vmatmul.mubr.f32.gmra.mrb[0].mxu0 %v918
        %v1348 = vpop.f32.mrb[0].mxu0
        %v1349 = vadd.f32 0.0, %v1348
        %v1350 = vpop.f32.mrb[0].mxu0
        %v1351 = vadd.f32 0.0, %v1350
        %1352 = vmatprep.mubr.f32.mxu0 0.0
        %1353 = vmatmul.mubr.f32.gmra.mrb[0].mxu0 %v921
        %v1354 = vpop.f32.mrb[0].mxu0
        %v1355 = vadd.f32 0.0, %v1354
        %v1356 = vpop.f32.mrb[0].mxu0
        %v1357 = vadd.f32 0.0, %v1356
        %1358 = vmatprep.mubr.f32.mxu0 0.0
        %1359 = vmatmul.mubr.f32.gmra.mrb[0].mxu0 %v924
        %v1360 = vpop.f32.mrb[0].mxu0
        %v1361 = vadd.f32 0.0, %v1360
        %v1362 = vpop.f32.mrb[0].mxu0
        %v1363 = vadd.f32 0.0, %v1362
        %1364 = vmatprep.mubr.f32.mxu0 0.0
        %1365 = vmatmul.mubr.f32.gmra.mrb[0].mxu0 %v927
        %v1366 = vpop.f32.mrb[0].mxu0
        %v1367 = vadd.f32 0.0, %v1366
        %v1368 = vpop.f32.mrb[0].mxu0
        %v1369 = vadd.f32 0.0, %v1368
        %1370 = vmatprep.mubr.f32.mxu0 0.0
        %1371 = vmatmul.mubr.f32.gmra.mrb[0].mxu0 %v930
        %v1372 = vpop.f32.mrb[0].mxu0
        %v1373 = vadd.f32 0.0, %v1372
        %v1374 = vpop.f32.mrb[0].mxu0
        %v1375 = vadd.f32 0.0, %v1374
        %1376 = vmatprep.mubr.f32.mxu0 0.0
        %1377 = vmatmul.mubr.f32.gmra.mrb[0].mxu0 %v933
        %v1378 = vpop.f32.mrb[0].mxu0
        %v1379 = vadd.f32 0.0, %v1378
        %v1380 = vpop.f32.mrb[0].mxu0
        %v1381 = vadd.f32 0.0, %v1380
        %1382 = vmatprep.mubr.f32.mxu0 0.0
        %1383 = vmatmul.mubr.f32.gmra.mrb[0].mxu0 %v936
        %v1384 = vpop.f32.mrb[0].mxu0
        %v1385 = vadd.f32 0.0, %v1384
        %v1386 = vpop.f32.mrb[0].mxu0
        %v1387 = vadd.f32 0.0, %v1386
        %1388 = vmatprep.mubr.f32.mxu0 0.0
        %1389 = vmatmul.mubr.f32.gmra.mrb[0].mxu0 %v939
        %v1390 = vpop.f32.mrb[0].mxu0
        %v1391 = vadd.f32 0.0, %v1390
        %v1392 = vpop.f32.mrb[0].mxu0
        %v1393 = vadd.f32 0.0, %v1392
        %1394 = vmatprep.mubr.f32.mxu0 0.0
        %1395 = vmatmul.mubr.f32.gmra.mrb[0].mxu0 %v942
        %v1396 = vpop.f32.mrb[0].mxu0
        %v1397 = vadd.f32 0.0, %v1396
        %v1398 = vpop.f32.mrb[0].mxu0
        %v1399 = vadd.f32 0.0, %v1398
        %1400 = vmatprep.mubr.f32.mxu0 0.0
        %1401 = vmatmul.mubr.f32.gmra.mrb[0].mxu0 %v945
        %v1402 = vpop.f32.mrb[0].mxu0
        %v1403 = vadd.f32 0.0, %v1402
        %v1404 = vpop.f32.mrb[0].mxu0
        %v1405 = vadd.f32 0.0, %v1404
        %1406 = vmatprep.mubr.f32.mxu0 0.0
        %1407 = vmatmul.mubr.f32.gmra.mrb[0].mxu0 %v948
        %v1408 = vpop.f32.mrb[0].mxu0
        %v1409 = vadd.f32 0.0, %v1408
        %v1410 = vpop.f32.mrb[0].mxu0
        %v1411 = vadd.f32 0.0, %v1410
        %1412 = vmatprep.mubr.f32.mxu0 0.0
        %1413 = vmatmul.mubr.f32.gmra.mrb[0].mxu0 %v951
        %v1414 = vpop.f32.mrb[0].mxu0
        %v1415 = vadd.f32 0.0, %v1414
        %v1416 = vpop.f32.mrb[0].mxu0
        %v1417 = vadd.f32 0.0, %v1416
        %1418 = vmatprep.mubr.f32.mxu0 0.0
        %1419 = vmatmul.mubr.f32.gmra.mrb[0].mxu0 %v954
        %v1420 = vpop.f32.mrb[0].mxu0
        %v1421 = vadd.f32 0.0, %v1420
        %v1422 = vpop.f32.mrb[0].mxu0
        %v1423 = vadd.f32 0.0, %v1422
        %1424 = vmatprep.mubr.f32.mxu0 0.0
        %1425 = vmatmul.mubr.f32.gmra.mrb[0].mxu0 %v957
        %v1426 = vpop.f32.mrb[0].mxu0
        %v1427 = vadd.f32 0.0, %v1426
        %v1428 = vpop.f32.mrb[0].mxu0
        %v1429 = vadd.f32 0.0, %v1428
        %1430 = vmatprep.mubr.f32.mxu0 0.0
        %1431 = vmatmul.mubr.f32.gmra.mrb[0].mxu0 %v960
        %v1432 = vpop.f32.mrb[0].mxu0
        %v1433 = vadd.f32 0.0, %v1432
        %v1434 = vpop.f32.mrb[0].mxu0
        %v1435 = vadd.f32 0.0, %v1434
        %1436 = vmatprep.mubr.f32.mxu0 0.0
        %1437 = vmatmul.mubr.f32.gmra.mrb[0].mxu0 %v963
        %v1438 = vpop.f32.mrb[0].mxu0
        %v1439 = vadd.f32 0.0, %v1438
        %v1440 = vpop.f32.mrb[0].mxu0
        %v1441 = vadd.f32 0.0, %v1440
        %1442 = vmatprep.mubr.f32.mxu0 0.0
        %1443 = vmatmul.mubr.f32.gmra.mrb[0].mxu0 %v966
        %v1444 = vpop.f32.mrb[0].mxu0
        %v1445 = vadd.f32 0.0, %v1444
        %v1446 = vpop.f32.mrb[0].mxu0
        %v1447 = vadd.f32 0.0, %v1446
        %1448 = vmatprep.mubr.f32.mxu0 0.0
        %1449 = vmatmul.mubr.f32.gmra.mrb[0].mxu0 %v969
        %v1450 = vpop.f32.mrb[0].mxu0
        %v1451 = vadd.f32 0.0, %v1450
        %v1452 = vpop.f32.mrb[0].mxu0
        %v1453 = vadd.f32 0.0, %v1452
        %1454 = vmatprep.mubr.f32.mxu0 0.0
        %1455 = vmatmul.mubr.f32.gmra.mrb[0].mxu0 %v972
        %v1456 = vpop.f32.mrb[0].mxu0
        %v1457 = vadd.f32 0.0, %v1456
        %v1458 = vpop.f32.mrb[0].mxu0
        %v1459 = vadd.f32 0.0, %v1458
        %1460 = vmatprep.mubr.f32.mxu0 0.0
        %1461 = vmatmul.mubr.f32.gmra.mrb[0].mxu0 %v975
        %v1462 = vpop.f32.mrb[0].mxu0
        %v1463 = vadd.f32 0.0, %v1462
        %v1464 = vpop.f32.mrb[0].mxu0
        %v1465 = vadd.f32 0.0, %v1464
        %1466 = vmatprep.mubr.f32.mxu0 0.0
        %1467 = vmatmul.mubr.f32.gmra.mrb[0].mxu0 %v978
        %v1468 = vpop.f32.mrb[0].mxu0
        %v1469 = vadd.f32 0.0, %v1468
        %v1470 = vpop.f32.mrb[0].mxu0
        %v1471 = vadd.f32 0.0, %v1470
        %1472 = vmatprep.mubr.f32.mxu0 0.0
        %1473 = vmatmul.mubr.f32.gmra.mrb[0].mxu0 %v981
        %v1474 = vpop.f32.mrb[0].mxu0
        %v1475 = vadd.f32 0.0, %v1474
        %v1476 = vpop.f32.mrb[0].mxu0
        %v1477 = vadd.f32 0.0, %v1476
        %1478 = vmatprep.mubr.f32.mxu0 0.0
        %1479 = vmatmul.mubr.f32.gmra.mrb[0].mxu0 %v984
        %v1480 = vpop.f32.mrb[0].mxu0
        %v1481 = vadd.f32 0.0, %v1480
        %v1482 = vpop.f32.mrb[0].mxu0
        %v1483 = vadd.f32 0.0, %v1482
        %1484 = vmatprep.mubr.f32.mxu0 0.0
        %1485 = vmatmul.mubr.f32.gmra.mrb[0].mxu0 %v987
        %v1486 = vpop.f32.mrb[0].mxu0
        %v1487 = vadd.f32 0.0, %v1486
        %v1488 = vpop.f32.mrb[0].mxu0
        %v1489 = vadd.f32 0.0, %v1488
        %1490 = vmatprep.mubr.f32.mxu0 0.0
        %1491 = vmatmul.mubr.f32.gmra.mrb[0].mxu0 %v990
        %v1492 = vpop.f32.mrb[0].mxu0
        %v1493 = vadd.f32 0.0, %v1492
        %v1494 = vpop.f32.mrb[0].mxu0
        %v1495 = vadd.f32 0.0, %v1494
        %1496 = vmatprep.mubr.f32.mxu0 0.0
        %1497 = vmatmul.mubr.f32.gmra.mrb[0].mxu0 %v993
        %v1498 = vpop.f32.mrb[0].mxu0
        %v1499 = vadd.f32 0.0, %v1498
        %v1500 = vpop.f32.mrb[0].mxu0
        %v1501 = vadd.f32 0.0, %v1500
        %1502 = vmatprep.mubr.f32.mxu0 0.0
        %1503 = vmatmul.mubr.f32.gmra.mrb[0].mxu0 %v996
        %v1504 = vpop.f32.mrb[0].mxu0
        %v1505 = vadd.f32 0.0, %v1504
        %v1506 = vpop.f32.mrb[0].mxu0
        %v1507 = vadd.f32 0.0, %v1506
        %1508 = vmatprep.mubr.f32.mxu0 0.0
        %1509 = vmatmul.mubr.f32.gmra.mrb[0].mxu0 %v999
        %v1510 = vpop.f32.mrb[0].mxu0
        %v1511 = vadd.f32 0.0, %v1510
        %v1512 = vpop.f32.mrb[0].mxu0
        %v1513 = vadd.f32 0.0, %v1512
        %1514 = vdwg.mxu0
        %1515 = vmatprep.subr.mxu0 0.0
        %1516 = vmatpush1.msra.mxu0 %v888
        %1517 = vmatprep.subr.mxu0 0.0
        %1518 = vmatpush1.msra.mxu0 %v893
        %1519 = vmatprep.subr.mxu0 0.0
        %1520 = vmatpush1.msra.mxu0 %v898
        %1521 = vmatprep.subr.mxu0 0.0
        %1522 = vmatpush1.msra.mxu0 %v903
        %1523 = vmatprep.subr.mxu0 0.0
        %1524 = vmatpush1.msra.mxu0 0.0
        %1525 = vmatprep.subr.mxu0 0.0
        %1526 = vmatpush1.msra.mxu0 0.0
        %1527 = vmatprep.subr.mxu0 0.0
        %1528 = vmatpush1.msra.mxu0 0.0
        %1529 = vmatprep.subr.mxu0 0.0
        %1530 = vmatpush1.msra.mxu0 0.0
        %1531 = vmatprep.subr.mxu0 0.0
        %1532 = vmatpush1.msra.mxu0 0.0
        %1533 = vmatprep.subr.mxu0 0.0
        %1534 = vmatpush1.msra.mxu0 0.0
        %1535 = vmatprep.subr.mxu0 0.0
        %1536 = vmatpush1.msra.mxu0 0.0
        %1537 = vmatprep.subr.mxu0 0.0
        %1538 = vmatpush1.msra.mxu0 0.0
        %1539 = vmatprep.subr.mxu0 0.0
        %1540 = vmatpush1.msra.mxu0 0.0
        %1541 = vmatprep.subr.mxu0 0.0
        %1542 = vmatpush1.msra.mxu0 0.0
        %1543 = vmatprep.subr.mxu0 0.0
        %1544 = vmatpush1.msra.mxu0 0.0
        %1545 = vmatprep.subr.mxu0 0.0
        %1546 = vmatpush1.msra.mxu0 0.0
        %1547 = vmatprep.subr.mxu0 0.0
        %1548 = vmatpush1.msra.mxu0 0.0
        %1549 = vmatprep.subr.mxu0 0.0
        %1550 = vmatpush1.msra.mxu0 0.0
        %1551 = vmatprep.subr.mxu0 0.0
        %1552 = vmatpush1.msra.mxu0 0.0
        %1553 = vmatprep.subr.mxu0 0.0
        %1554 = vmatpush1.msra.mxu0 0.0
        %1555 = vmatprep.subr.mxu0 0.0
        %1556 = vmatpush1.msra.mxu0 0.0
        %1557 = vmatprep.subr.mxu0 0.0
        %1558 = vmatpush1.msra.mxu0 0.0
        %1559 = vmatprep.subr.mxu0 0.0
        %1560 = vmatpush1.msra.mxu0 0.0
        %1561 = vmatprep.subr.mxu0 0.0
        %1562 = vmatpush1.msra.mxu0 0.0
        %1563 = vmatprep.subr.mxu0 0.0
        %1564 = vmatpush1.msra.mxu0 0.0
        %1565 = vmatprep.subr.mxu0 0.0
        %1566 = vmatpush1.msra.mxu0 0.0
        %1567 = vmatprep.subr.mxu0 0.0
        %1568 = vmatpush1.msra.mxu0 0.0
        %1569 = vmatprep.subr.mxu0 0.0
        %1570 = vmatpush1.msra.mxu0 0.0
        %1571 = vmatprep.subr.mxu0 0.0
        %1572 = vmatpush1.msra.mxu0 0.0
        %1573 = vmatprep.subr.mxu0 0.0
        %1574 = vmatpush1.msra.mxu0 0.0
        %1575 = vmatprep.subr.mxu0 0.0
        %1576 = vmatpush1.msra.mxu0 0.0
        %1577 = vmatprep.subr.mxu0 0.0
        %1578 = vmatpush1.msra.mxu0 0.0
        %1579 = vmatprep.mubr.f32.mxu0 0.0
        %1580 = vmatmul.mubr.f32.gmra.mrb[0].mxu0 %v906
        %v1581 = vpop.f32.mrb[0].mxu0
        %v1582 = vadd.f32 0.0, %v1581
        %v1583 = vpop.f32.mrb[0].mxu0
        %1584 = vmatprep.mubr.f32.mxu0 0.0
        %1585 = vmatmul.mubr.f32.gmra.mrb[0].mxu0 %v909
        %v1586 = vpop.f32.mrb[0].mxu0
        %v1587 = vadd.f32 0.0, %v1586
        %v1588 = vpop.f32.mrb[0].mxu0
        %1589 = vmatprep.mubr.f32.mxu0 0.0
        %1590 = vmatmul.mubr.f32.gmra.mrb[0].mxu0 %v912
        %v1591 = vpop.f32.mrb[0].mxu0
        %v1592 = vadd.f32 0.0, %v1591
        %v1593 = vpop.f32.mrb[0].mxu0
        %1594 = vmatprep.mubr.f32.mxu0 0.0
        %1595 = vmatmul.mubr.f32.gmra.mrb[0].mxu0 %v915
        %v1596 = vpop.f32.mrb[0].mxu0
        %v1597 = vadd.f32 0.0, %v1596
        %v1598 = vpop.f32.mrb[0].mxu0
        %1599 = vmatprep.mubr.f32.mxu0 0.0
        %1600 = vmatmul.mubr.f32.gmra.mrb[0].mxu0 %v918
        %v1601 = vpop.f32.mrb[0].mxu0
        %v1602 = vadd.f32 0.0, %v1601
        %v1603 = vpop.f32.mrb[0].mxu0
        %1604 = vmatprep.mubr.f32.mxu0 0.0
        %1605 = vmatmul.mubr.f32.gmra.mrb[0].mxu0 %v921
        %v1606 = vpop.f32.mrb[0].mxu0
        %v1607 = vadd.f32 0.0, %v1606
        %v1608 = vpop.f32.mrb[0].mxu0
        %1609 = vmatprep.mubr.f32.mxu0 0.0
        %1610 = vmatmul.mubr.f32.gmra.mrb[0].mxu0 %v924
        %v1611 = vpop.f32.mrb[0].mxu0
        %v1612 = vadd.f32 0.0, %v1611
        %v1613 = vpop.f32.mrb[0].mxu0
        %1614 = vmatprep.mubr.f32.mxu0 0.0
        %1615 = vmatmul.mubr.f32.gmra.mrb[0].mxu0 %v927
        %v1616 = vpop.f32.mrb[0].mxu0
        %v1617 = vadd.f32 0.0, %v1616
        %v1618 = vpop.f32.mrb[0].mxu0
        %1619 = vmatprep.mubr.f32.mxu0 0.0
        %1620 = vmatmul.mubr.f32.gmra.mrb[0].mxu0 %v930
        %v1621 = vpop.f32.mrb[0].mxu0
        %v1622 = vadd.f32 0.0, %v1621
        %v1623 = vpop.f32.mrb[0].mxu0
        %1624 = vmatprep.mubr.f32.mxu0 0.0
        %1625 = vmatmul.mubr.f32.gmra.mrb[0].mxu0 %v933
        %v1626 = vpop.f32.mrb[0].mxu0
        %v1627 = vadd.f32 0.0, %v1626
        %v1628 = vpop.f32.mrb[0].mxu0
        %1629 = vmatprep.mubr.f32.mxu0 0.0
        %1630 = vmatmul.mubr.f32.gmra.mrb[0].mxu0 %v936
        %v1631 = vpop.f32.mrb[0].mxu0
        %v1632 = vadd.f32 0.0, %v1631
        %v1633 = vpop.f32.mrb[0].mxu0
        %1634 = vmatprep.mubr.f32.mxu0 0.0
        %1635 = vmatmul.mubr.f32.gmra.mrb[0].mxu0 %v939
        %v1636 = vpop.f32.mrb[0].mxu0
        %v1637 = vadd.f32 0.0, %v1636
        %v1638 = vpop.f32.mrb[0].mxu0
        %1639 = vmatprep.mubr.f32.mxu0 0.0
        %1640 = vmatmul.mubr.f32.gmra.mrb[0].mxu0 %v942
        %v1641 = vpop.f32.mrb[0].mxu0
        %v1642 = vadd.f32 0.0, %v1641
        %v1643 = vpop.f32.mrb[0].mxu0
        %1644 = vmatprep.mubr.f32.mxu0 0.0
        %1645 = vmatmul.mubr.f32.gmra.mrb[0].mxu0 %v945
        %v1646 = vpop.f32.mrb[0].mxu0
        %v1647 = vadd.f32 0.0, %v1646
        %v1648 = vpop.f32.mrb[0].mxu0
        %1649 = vmatprep.mubr.f32.mxu0 0.0
        %1650 = vmatmul.mubr.f32.gmra.mrb[0].mxu0 %v948
        %v1651 = vpop.f32.mrb[0].mxu0
        %v1652 = vadd.f32 0.0, %v1651
        %v1653 = vpop.f32.mrb[0].mxu0
        %1654 = vmatprep.mubr.f32.mxu0 0.0
        %1655 = vmatmul.mubr.f32.gmra.mrb[0].mxu0 %v951
        %v1656 = vpop.f32.mrb[0].mxu0
        %v1657 = vadd.f32 0.0, %v1656
        %v1658 = vpop.f32.mrb[0].mxu0
        %1659 = vmatprep.mubr.f32.mxu0 0.0
        %1660 = vmatmul.mubr.f32.gmra.mrb[0].mxu0 %v954
        %v1661 = vpop.f32.mrb[0].mxu0
        %v1662 = vadd.f32 0.0, %v1661
        %v1663 = vpop.f32.mrb[0].mxu0
        %1664 = vmatprep.mubr.f32.mxu0 0.0
        %1665 = vmatmul.mubr.f32.gmra.mrb[0].mxu0 %v957
        %v1666 = vpop.f32.mrb[0].mxu0
        %v1667 = vadd.f32 0.0, %v1666
        %v1668 = vpop.f32.mrb[0].mxu0
        %1669 = vmatprep.mubr.f32.mxu0 0.0
        %1670 = vmatmul.mubr.f32.gmra.mrb[0].mxu0 %v960
        %v1671 = vpop.f32.mrb[0].mxu0
        %v1672 = vadd.f32 0.0, %v1671
        %v1673 = vpop.f32.mrb[0].mxu0
        %1674 = vmatprep.mubr.f32.mxu0 0.0
        %1675 = vmatmul.mubr.f32.gmra.mrb[0].mxu0 %v963
        %v1676 = vpop.f32.mrb[0].mxu0
        %v1677 = vadd.f32 0.0, %v1676
        %v1678 = vpop.f32.mrb[0].mxu0
        %1679 = vmatprep.mubr.f32.mxu0 0.0
        %1680 = vmatmul.mubr.f32.gmra.mrb[0].mxu0 %v966
        %v1681 = vpop.f32.mrb[0].mxu0
        %v1682 = vadd.f32 0.0, %v1681
        %v1683 = vpop.f32.mrb[0].mxu0
        %1684 = vmatprep.mubr.f32.mxu0 0.0
        %1685 = vmatmul.mubr.f32.gmra.mrb[0].mxu0 %v969
        %v1686 = vpop.f32.mrb[0].mxu0
        %v1687 = vadd.f32 0.0, %v1686
        %v1688 = vpop.f32.mrb[0].mxu0
        %1689 = vmatprep.mubr.f32.mxu0 0.0
        %1690 = vmatmul.mubr.f32.gmra.mrb[0].mxu0 %v972
        %v1691 = vpop.f32.mrb[0].mxu0
        %v1692 = vadd.f32 0.0, %v1691
        %v1693 = vpop.f32.mrb[0].mxu0
        %1694 = vmatprep.mubr.f32.mxu0 0.0
        %1695 = vmatmul.mubr.f32.gmra.mrb[0].mxu0 %v975
        %v1696 = vpop.f32.mrb[0].mxu0
        %v1697 = vadd.f32 0.0, %v1696
        %v1698 = vpop.f32.mrb[0].mxu0
        %1699 = vmatprep.mubr.f32.mxu0 0.0
        %1700 = vmatmul.mubr.f32.gmra.mrb[0].mxu0 %v978
        %v1701 = vpop.f32.mrb[0].mxu0
        %v1702 = vadd.f32 0.0, %v1701
        %v1703 = vpop.f32.mrb[0].mxu0
        %1704 = vmatprep.mubr.f32.mxu0 0.0
        %1705 = vmatmul.mubr.f32.gmra.mrb[0].mxu0 %v981
        %v1706 = vpop.f32.mrb[0].mxu0
        %v1707 = vadd.f32 0.0, %v1706
        %v1708 = vpop.f32.mrb[0].mxu0
        %1709 = vmatprep.mubr.f32.mxu0 0.0
        %1710 = vmatmul.mubr.f32.gmra.mrb[0].mxu0 %v984
        %v1711 = vpop.f32.mrb[0].mxu0
        %v1712 = vadd.f32 0.0, %v1711
        %v1713 = vpop.f32.mrb[0].mxu0
        %1714 = vmatprep.mubr.f32.mxu0 0.0
        %1715 = vmatmul.mubr.f32.gmra.mrb[0].mxu0 %v987
        %v1716 = vpop.f32.mrb[0].mxu0
        %v1717 = vadd.f32 0.0, %v1716
        %v1718 = vpop.f32.mrb[0].mxu0
        %1719 = vmatprep.mubr.f32.mxu0 0.0
        %1720 = vmatmul.mubr.f32.gmra.mrb[0].mxu0 %v990
        %v1721 = vpop.f32.mrb[0].mxu0
        %v1722 = vadd.f32 0.0, %v1721
        %v1723 = vpop.f32.mrb[0].mxu0
        %1724 = vmatprep.mubr.f32.mxu0 0.0
        %1725 = vmatmul.mubr.f32.gmra.mrb[0].mxu0 %v993
        %v1726 = vpop.f32.mrb[0].mxu0
        %v1727 = vadd.f32 0.0, %v1726
        %v1728 = vpop.f32.mrb[0].mxu0
        %1729 = vmatprep.mubr.f32.mxu0 0.0
        %1730 = vmatmul.mubr.f32.gmra.mrb[0].mxu0 %v996
        %v1731 = vpop.f32.mrb[0].mxu0
        %v1732 = vadd.f32 0.0, %v1731
        %v1733 = vpop.f32.mrb[0].mxu0
        %1734 = vmatprep.mubr.f32.mxu0 0.0
        %1735 = vmatmul.mubr.f32.gmra.mrb[0].mxu0 %v999
        %v1736 = vpop.f32.mrb[0].mxu0
        %v1737 = vadd.f32 0.0, %v1736
        %v1738 = vpop.f32.mrb[0].mxu0
        %1739 = vdwg.mxu0
        %v1740 = vrot.slane %v1070, 1
        %v1741 = vrot.slane %v1076, 1
        %v1742 = vrot.slane %v1082, 1
        %v1743 = vrot.slane %v1088, 1
        %v1744 = vrot.slane %v1094, 1
        %v1745 = vrot.slane %v1100, 1
        %v1746 = vrot.slane %v1106, 1
        %v1747 = vrot.slane %v1112, 1
        %v1748 = vrot.slane %v1118, 1
        %v1749 = vrot.slane %v1124, 1
        %v1750 = vrot.slane %v1130, 1
        %v1751 = vrot.slane %v1136, 1
        %v1752 = vrot.slane %v1142, 1
        %v1753 = vrot.slane %v1148, 1
        %v1754 = vrot.slane %v1154, 1
        %v1755 = vrot.slane %v1160, 1
        %v1756 = vrot.slane %v1166, 1
        %v1757 = vrot.slane %v1172, 1
        %v1758 = vrot.slane %v1178, 1
        %v1759 = vrot.slane %v1184, 1
        %v1760 = vrot.slane %v1190, 1
        %v1761 = vrot.slane %v1196, 1
        %v1762 = vrot.slane %v1202, 1
        %v1763 = vrot.slane %v1208, 1
        %v1764 = vrot.slane %v1214, 1
        %v1765 = vrot.slane %v1220, 1
        %v1766 = vrot.slane %v1226, 1
        %v1767 = vrot.slane %v1232, 1
        %v1768 = vrot.slane %v1238, 1
        %v1769 = vrot.slane %v1244, 1
        %v1770 = vrot.slane %v1250, 1
        %v1771 = vrot.slane %v1256, 1
        %v1772 = vlaneseq
        %v1773 = vshrl.u32 %v1772, 7
        %vm1774 = vcmp.lt.s32.totalorder %v1773, 7
        %v1775 = vsel %vm1774, %v1770, %v1771
        %v1776 = vsel %vm1774, %v1769, %v1770
        %v1777 = vsel %vm1774, %v1768, %v1769
        %v1778 = vsel %vm1774, %v1767, %v1768
        %v1779 = vsel %vm1774, %v1766, %v1767
        %v1780 = vsel %vm1774, %v1765, %v1766
        %v1781 = vsel %vm1774, %v1764, %v1765
        %v1782 = vsel %vm1774, %v1763, %v1764
        %v1783 = vsel %vm1774, %v1762, %v1763
        %v1784 = vsel %vm1774, %v1761, %v1762
        %v1785 = vsel %vm1774, %v1760, %v1761
        %v1786 = vsel %vm1774, %v1759, %v1760
        %v1787 = vsel %vm1774, %v1758, %v1759
        %v1788 = vsel %vm1774, %v1757, %v1758
        %v1789 = vsel %vm1774, %v1756, %v1757
        %v1790 = vsel %vm1774, %v1755, %v1756
        %v1791 = vsel %vm1774, %v1754, %v1755
        %v1792 = vsel %vm1774, %v1753, %v1754
        %v1793 = vsel %vm1774, %v1752, %v1753
        %v1794 = vsel %vm1774, %v1751, %v1752
        %v1795 = vsel %vm1774, %v1750, %v1751
        %v1796 = vsel %vm1774, %v1749, %v1750
        %v1797 = vsel %vm1774, %v1748, %v1749
        %v1798 = vsel %vm1774, %v1747, %v1748
        %v1799 = vsel %vm1774, %v1746, %v1747
        %v1800 = vsel %vm1774, %v1745, %v1746
        %v1801 = vsel %vm1774, %v1744, %v1745
        %v1802 = vsel %vm1774, %v1743, %v1744
        %v1803 = vsel %vm1774, %v1742, %v1743
        %v1804 = vsel %vm1774, %v1741, %v1742
        %v1805 = vsel %vm1774, %v1740, %v1741
        %v1806 = vsel %vm1774, %v1771, %v1740
        %v1807 = vadd.f32 %v1068, %v1805
        %v1808 = vadd.f32 %v1074, %v1804
        %v1809 = vadd.f32 %v1080, %v1803
        %v1810 = vadd.f32 %v1086, %v1802
        %v1811 = vadd.f32 %v1092, %v1801
        %v1812 = vadd.f32 %v1098, %v1800
        %v1813 = vadd.f32 %v1104, %v1799
        %v1814 = vadd.f32 %v1110, %v1798
        %v1815 = vadd.f32 %v1116, %v1797
        %v1816 = vadd.f32 %v1122, %v1796
        %v1817 = vadd.f32 %v1128, %v1795
        %v1818 = vadd.f32 %v1134, %v1794
        %v1819 = vadd.f32 %v1140, %v1793
        %v1820 = vadd.f32 %v1146, %v1792
        %v1821 = vadd.f32 %v1152, %v1791
        %v1822 = vadd.f32 %v1158, %v1790
        %v1823 = vadd.f32 %v1164, %v1789
        %v1824 = vadd.f32 %v1170, %v1788
        %v1825 = vadd.f32 %v1176, %v1787
        %v1826 = vadd.f32 %v1182, %v1786
        %v1827 = vadd.f32 %v1188, %v1785
        %v1828 = vadd.f32 %v1194, %v1784
        %v1829 = vadd.f32 %v1200, %v1783
        %v1830 = vadd.f32 %v1206, %v1782
        %v1831 = vadd.f32 %v1212, %v1781
        %v1832 = vadd.f32 %v1218, %v1780
        %v1833 = vadd.f32 %v1224, %v1779
        %v1834 = vadd.f32 %v1230, %v1778
        %v1835 = vadd.f32 %v1236, %v1777
        %v1836 = vadd.f32 %v1242, %v1776
        %v1837 = vadd.f32 %v1248, %v1775
        %v1838 = vadd.f32 %v1254, %v1806
        %v1839 = vrot.slane %v1325, 2
        %v1840 = vrot.slane %v1331, 2
        %v1841 = vrot.slane %v1337, 2
        %v1842 = vrot.slane %v1343, 2
        %v1843 = vrot.slane %v1349, 2
        %v1844 = vrot.slane %v1355, 2
        %v1845 = vrot.slane %v1361, 2
        %v1846 = vrot.slane %v1367, 2
        %v1847 = vrot.slane %v1373, 2
        %v1848 = vrot.slane %v1379, 2
        %v1849 = vrot.slane %v1385, 2
        %v1850 = vrot.slane %v1391, 2
        %v1851 = vrot.slane %v1397, 2
        %v1852 = vrot.slane %v1403, 2
        %v1853 = vrot.slane %v1409, 2
        %v1854 = vrot.slane %v1415, 2
        %v1855 = vrot.slane %v1421, 2
        %v1856 = vrot.slane %v1427, 2
        %v1857 = vrot.slane %v1433, 2
        %v1858 = vrot.slane %v1439, 2
        %v1859 = vrot.slane %v1445, 2
        %v1860 = vrot.slane %v1451, 2
        %v1861 = vrot.slane %v1457, 2
        %v1862 = vrot.slane %v1463, 2
        %v1863 = vrot.slane %v1469, 2
        %v1864 = vrot.slane %v1475, 2
        %v1865 = vrot.slane %v1481, 2
        %v1866 = vrot.slane %v1487, 2
        %v1867 = vrot.slane %v1493, 2
        %v1868 = vrot.slane %v1499, 2
        %v1869 = vrot.slane %v1505, 2
        %v1870 = vrot.slane %v1511, 2
        %vm1871 = vcmp.lt.s32.totalorder %v1773, 6
        %v1872 = vsel %vm1871, %v1869, %v1870
        %v1873 = vsel %vm1871, %v1868, %v1869
        %v1874 = vsel %vm1871, %v1867, %v1868
        %v1875 = vsel %vm1871, %v1866, %v1867
        %v1876 = vsel %vm1871, %v1865, %v1866
        %v1877 = vsel %vm1871, %v1864, %v1865
        %v1878 = vsel %vm1871, %v1863, %v1864
        %v1879 = vsel %vm1871, %v1862, %v1863
        %v1880 = vsel %vm1871, %v1861, %v1862
        %v1881 = vsel %vm1871, %v1860, %v1861
        %v1882 = vsel %vm1871, %v1859, %v1860
        %v1883 = vsel %vm1871, %v1858, %v1859
        %v1884 = vsel %vm1871, %v1857, %v1858
        %v1885 = vsel %vm1871, %v1856, %v1857
        %v1886 = vsel %vm1871, %v1855, %v1856
        %v1887 = vsel %vm1871, %v1854, %v1855
        %v1888 = vsel %vm1871, %v1853, %v1854
        %v1889 = vsel %vm1871, %v1852, %v1853
        %v1890 = vsel %vm1871, %v1851, %v1852
        %v1891 = vsel %vm1871, %v1850, %v1851
        %v1892 = vsel %vm1871, %v1849, %v1850
        %v1893 = vsel %vm1871, %v1848, %v1849
        %v1894 = vsel %vm1871, %v1847, %v1848
        %v1895 = vsel %vm1871, %v1846, %v1847
        %v1896 = vsel %vm1871, %v1845, %v1846
        %v1897 = vsel %vm1871, %v1844, %v1845
        %v1898 = vsel %vm1871, %v1843, %v1844
        %v1899 = vsel %vm1871, %v1842, %v1843
        %v1900 = vsel %vm1871, %v1841, %v1842
        %v1901 = vsel %vm1871, %v1840, %v1841
        %v1902 = vsel %vm1871, %v1839, %v1840
        %v1903 = vsel %vm1871, %v1870, %v1839
        %v1904 = vadd.f32 %v1807, %v1902
        %v1905 = vadd.f32 %v1808, %v1901
        %v1906 = vadd.f32 %v1809, %v1900
        %v1907 = vadd.f32 %v1810, %v1899
        %v1908 = vadd.f32 %v1811, %v1898
        %v1909 = vadd.f32 %v1812, %v1897
        %v1910 = vadd.f32 %v1813, %v1896
        %v1911 = vadd.f32 %v1814, %v1895
        %v1912 = vadd.f32 %v1815, %v1894
        %v1913 = vadd.f32 %v1816, %v1893
        %v1914 = vadd.f32 %v1817, %v1892
        %v1915 = vadd.f32 %v1818, %v1891
        %v1916 = vadd.f32 %v1819, %v1890
        %v1917 = vadd.f32 %v1820, %v1889
        %v1918 = vadd.f32 %v1821, %v1888
        %v1919 = vadd.f32 %v1822, %v1887
        %v1920 = vadd.f32 %v1823, %v1886
        %v1921 = vadd.f32 %v1824, %v1885
        %v1922 = vadd.f32 %v1825, %v1884
        %v1923 = vadd.f32 %v1826, %v1883
        %v1924 = vadd.f32 %v1827, %v1882
        %v1925 = vadd.f32 %v1828, %v1881
        %v1926 = vadd.f32 %v1829, %v1880
        %v1927 = vadd.f32 %v1830, %v1879
        %v1928 = vadd.f32 %v1831, %v1878
        %v1929 = vadd.f32 %v1832, %v1877
        %v1930 = vadd.f32 %v1833, %v1876
        %v1931 = vadd.f32 %v1834, %v1875
        %v1932 = vadd.f32 %v1835, %v1874
        %v1933 = vadd.f32 %v1836, %v1873
        %v1934 = vadd.f32 %v1837, %v1872
        %v1935 = vadd.f32 %v1838, %v1903
        %v1936 = vrot.slane %v1327, 3
        %v1937 = vrot.slane %v1333, 3
        %v1938 = vrot.slane %v1339, 3
        %v1939 = vrot.slane %v1345, 3
        %v1940 = vrot.slane %v1351, 3
        %v1941 = vrot.slane %v1357, 3
        %v1942 = vrot.slane %v1363, 3
        %v1943 = vrot.slane %v1369, 3
        %v1944 = vrot.slane %v1375, 3
        %v1945 = vrot.slane %v1381, 3
        %v1946 = vrot.slane %v1387, 3
        %v1947 = vrot.slane %v1393, 3
        %v1948 = vrot.slane %v1399, 3
        %v1949 = vrot.slane %v1405, 3
        %v1950 = vrot.slane %v1411, 3
        %v1951 = vrot.slane %v1417, 3
        %v1952 = vrot.slane %v1423, 3
        %v1953 = vrot.slane %v1429, 3
        %v1954 = vrot.slane %v1435, 3
        %v1955 = vrot.slane %v1441, 3
        %v1956 = vrot.slane %v1447, 3
        %v1957 = vrot.slane %v1453, 3
        %v1958 = vrot.slane %v1459, 3
        %v1959 = vrot.slane %v1465, 3
        %v1960 = vrot.slane %v1471, 3
        %v1961 = vrot.slane %v1477, 3
        %v1962 = vrot.slane %v1483, 3
        %v1963 = vrot.slane %v1489, 3
        %v1964 = vrot.slane %v1495, 3
        %v1965 = vrot.slane %v1501, 3
        %v1966 = vrot.slane %v1507, 3
        %v1967 = vrot.slane %v1513, 3
        %vm1968 = vcmp.lt.s32.totalorder %v1773, 5
        %v1969 = vsel %vm1968, %v1966, %v1967
        %v1970 = vsel %vm1968, %v1965, %v1966
        %v1971 = vsel %vm1968, %v1964, %v1965
        %v1972 = vsel %vm1968, %v1963, %v1964
        %v1973 = vsel %vm1968, %v1962, %v1963
        %v1974 = vsel %vm1968, %v1961, %v1962
        %v1975 = vsel %vm1968, %v1960, %v1961
        %v1976 = vsel %vm1968, %v1959, %v1960
        %v1977 = vsel %vm1968, %v1958, %v1959
        %v1978 = vsel %vm1968, %v1957, %v1958
        %v1979 = vsel %vm1968, %v1956, %v1957
        %v1980 = vsel %vm1968, %v1955, %v1956
        %v1981 = vsel %vm1968, %v1954, %v1955
        %v1982 = vsel %vm1968, %v1953, %v1954
        %v1983 = vsel %vm1968, %v1952, %v1953
        %v1984 = vsel %vm1968, %v1951, %v1952
        %v1985 = vsel %vm1968, %v1950, %v1951
        %v1986 = vsel %vm1968, %v1949, %v1950
        %v1987 = vsel %vm1968, %v1948, %v1949
        %v1988 = vsel %vm1968, %v1947, %v1948
        %v1989 = vsel %vm1968, %v1946, %v1947
        %v1990 = vsel %vm1968, %v1945, %v1946
        %v1991 = vsel %vm1968, %v1944, %v1945
        %v1992 = vsel %vm1968, %v1943, %v1944
        %v1993 = vsel %vm1968, %v1942, %v1943
        %v1994 = vsel %vm1968, %v1941, %v1942
        %v1995 = vsel %vm1968, %v1940, %v1941
        %v1996 = vsel %vm1968, %v1939, %v1940
        %v1997 = vsel %vm1968, %v1938, %v1939
        %v1998 = vsel %vm1968, %v1937, %v1938
        %v1999 = vsel %vm1968, %v1936, %v1937
        %v2000 = vsel %vm1968, %v1967, %v1936
        %v2001 = vadd.f32 %v1904, %v1999
        %v2002 = vadd.f32 %v1905, %v1998
        %v2003 = vadd.f32 %v1906, %v1997
        %v2004 = vadd.f32 %v1907, %v1996
        %v2005 = vadd.f32 %v1908, %v1995
        %v2006 = vadd.f32 %v1909, %v1994
        %v2007 = vadd.f32 %v1910, %v1993
        %v2008 = vadd.f32 %v1911, %v1992
        %v2009 = vadd.f32 %v1912, %v1991
        %v2010 = vadd.f32 %v1913, %v1990
        %v2011 = vadd.f32 %v1914, %v1989
        %v2012 = vadd.f32 %v1915, %v1988
        %v2013 = vadd.f32 %v1916, %v1987
        %v2014 = vadd.f32 %v1917, %v1986
        %v2015 = vadd.f32 %v1918, %v1985
        %v2016 = vadd.f32 %v1919, %v1984
        %v2017 = vadd.f32 %v1920, %v1983
        %v2018 = vadd.f32 %v1921, %v1982
        %v2019 = vadd.f32 %v1922, %v1981
        %v2020 = vadd.f32 %v1923, %v1980
        %v2021 = vadd.f32 %v1924, %v1979
        %v2022 = vadd.f32 %v1925, %v1978
        %v2023 = vadd.f32 %v1926, %v1977
        %v2024 = vadd.f32 %v1927, %v1976
        %v2025 = vadd.f32 %v1928, %v1975
        %v2026 = vadd.f32 %v1929, %v1974
        %v2027 = vadd.f32 %v1930, %v1973
        %v2028 = vadd.f32 %v1931, %v1972
        %v2029 = vadd.f32 %v1932, %v1971
        %v2030 = vadd.f32 %v1933, %v1970
        %v2031 = vadd.f32 %v1934, %v1969
        %v2032 = vadd.f32 %v1935, %v2000
        %v2033 = vrot.slane %v1582, 4
        %v2034 = vrot.slane %v1587, 4
        %v2035 = vrot.slane %v1592, 4
        %v2036 = vrot.slane %v1597, 4
        %v2037 = vrot.slane %v1602, 4
        %v2038 = vrot.slane %v1607, 4
        %v2039 = vrot.slane %v1612, 4
        %v2040 = vrot.slane %v1617, 4
        %v2041 = vrot.slane %v1622, 4
        %v2042 = vrot.slane %v1627, 4
        %v2043 = vrot.slane %v1632, 4
        %v2044 = vrot.slane %v1637, 4
        %v2045 = vrot.slane %v1642, 4
        %v2046 = vrot.slane %v1647, 4
        %v2047 = vrot.slane %v1652, 4
        %v2048 = vrot.slane %v1657, 4
        %v2049 = vrot.slane %v1662, 4
        %v2050 = vrot.slane %v1667, 4
        %v2051 = vrot.slane %v1672, 4
        %v2052 = vrot.slane %v1677, 4
        %v2053 = vrot.slane %v1682, 4
        %v2054 = vrot.slane %v1687, 4
        %v2055 = vrot.slane %v1692, 4
        %v2056 = vrot.slane %v1697, 4
        %v2057 = vrot.slane %v1702, 4
        %v2058 = vrot.slane %v1707, 4
        %v2059 = vrot.slane %v1712, 4
        %v2060 = vrot.slane %v1717, 4
        %v2061 = vrot.slane %v1722, 4
        %v2062 = vrot.slane %v1727, 4
        %v2063 = vrot.slane %v1732, 4
        %v2064 = vrot.slane %v1737, 4
        %vm2065 = vcmp.lt.s32.totalorder %v1773, 4
        %v2066 = vsel %vm2065, %v2063, %v2064
        %v2067 = vsel %vm2065, %v2062, %v2063
        %v2068 = vsel %vm2065, %v2061, %v2062
        %v2069 = vsel %vm2065, %v2060, %v2061
        %v2070 = vsel %vm2065, %v2059, %v2060
        %v2071 = vsel %vm2065, %v2058, %v2059
        %v2072 = vsel %vm2065, %v2057, %v2058
        %v2073 = vsel %vm2065, %v2056, %v2057
        %v2074 = vsel %vm2065, %v2055, %v2056
        %v2075 = vsel %vm2065, %v2054, %v2055
        %v2076 = vsel %vm2065, %v2053, %v2054
        %v2077 = vsel %vm2065, %v2052, %v2053
        %v2078 = vsel %vm2065, %v2051, %v2052
        %v2079 = vsel %vm2065, %v2050, %v2051
        %v2080 = vsel %vm2065, %v2049, %v2050
        %v2081 = vsel %vm2065, %v2048, %v2049
        %v2082 = vsel %vm2065, %v2047, %v2048
        %v2083 = vsel %vm2065, %v2046, %v2047
        %v2084 = vsel %vm2065, %v2045, %v2046
        %v2085 = vsel %vm2065, %v2044, %v2045
        %v2086 = vsel %vm2065, %v2043, %v2044
        %v2087 = vsel %vm2065, %v2042, %v2043
        %v2088 = vsel %vm2065, %v2041, %v2042
        %v2089 = vsel %vm2065, %v2040, %v2041
        %v2090 = vsel %vm2065, %v2039, %v2040
        %v2091 = vsel %vm2065, %v2038, %v2039
        %v2092 = vsel %vm2065, %v2037, %v2038
        %v2093 = vsel %vm2065, %v2036, %v2037
        %v2094 = vsel %vm2065, %v2035, %v2036
        %v2095 = vsel %vm2065, %v2034, %v2035
        %v2096 = vsel %vm2065, %v2033, %v2034
        %v2097 = vsel %vm2065, %v2064, %v2033
        %v2098 = vadd.f32 %v2001, %v2096
        %v2099 = vadd.f32 %v2002, %v2095
        %v2100 = vadd.f32 %v2003, %v2094
        %v2101 = vadd.f32 %v2004, %v2093
        %v2102 = vadd.f32 %v2005, %v2092
        %v2103 = vadd.f32 %v2006, %v2091
        %v2104 = vadd.f32 %v2007, %v2090
        %v2105 = vadd.f32 %v2008, %v2089
        %v2106 = vadd.f32 %v2009, %v2088
        %v2107 = vadd.f32 %v2010, %v2087
        %v2108 = vadd.f32 %v2011, %v2086
        %v2109 = vadd.f32 %v2012, %v2085
        %v2110 = vadd.f32 %v2013, %v2084
        %v2111 = vadd.f32 %v2014, %v2083
        %v2112 = vadd.f32 %v2015, %v2082
        %v2113 = vadd.f32 %v2016, %v2081
        %v2114 = vadd.f32 %v2017, %v2080
        %v2115 = vadd.f32 %v2018, %v2079
        %v2116 = vadd.f32 %v2019, %v2078
        %v2117 = vadd.f32 %v2020, %v2077
        %v2118 = vadd.f32 %v2021, %v2076
        %v2119 = vadd.f32 %v2022, %v2075
        %v2120 = vadd.f32 %v2023, %v2074
        %v2121 = vadd.f32 %v2024, %v2073
        %v2122 = vadd.f32 %v2025, %v2072
        %v2123 = vadd.f32 %v2026, %v2071
        %v2124 = vadd.f32 %v2027, %v2070
        %v2125 = vadd.f32 %v2028, %v2069
        %v2126 = vadd.f32 %v2029, %v2068
        %v2127 = vadd.f32 %v2030, %v2067
        %v2128 = vadd.f32 %v2031, %v2066
        %v2129 = vadd.f32 %v2032, %v2097
        %v2130 = vld [vmem:[%s3] sm:$0x1]
        %v2132 = vlaneseq
        %v2133 = vshrl.u32 %v2132, 7
        %v2134 = vsub.s32 0, %v2133
        %v2135 = vrot.slane %v2130, %v2134
        %v2137 = vadd.f32 %v2098, %v2135
        %v2138 = vadd.f32 %v2099, %v2135
        %v2139 = vadd.f32 %v2100, %v2135
        %v2140 = vadd.f32 %v2101, %v2135
        %v2141 = vadd.f32 %v2102, %v2135
        %v2142 = vadd.f32 %v2103, %v2135
        %v2143 = vadd.f32 %v2104, %v2135
        %v2144 = vadd.f32 %v2105, %v2135
        %v2145 = vadd.f32 %v2106, %v2135
        %v2146 = vadd.f32 %v2107, %v2135
        %v2147 = vadd.f32 %v2108, %v2135
        %v2148 = vadd.f32 %v2109, %v2135
        %v2149 = vadd.f32 %v2110, %v2135
        %v2150 = vadd.f32 %v2111, %v2135
        %v2151 = vadd.f32 %v2112, %v2135
        %v2152 = vadd.f32 %v2113, %v2135
        %v2153 = vadd.f32 %v2114, %v2135
        %v2154 = vadd.f32 %v2115, %v2135
        %v2155 = vadd.f32 %v2116, %v2135
        %v2156 = vadd.f32 %v2117, %v2135
        %v2157 = vadd.f32 %v2118, %v2135
        %v2158 = vadd.f32 %v2119, %v2135
        %v2159 = vadd.f32 %v2120, %v2135
        %v2160 = vadd.f32 %v2121, %v2135
        %v2161 = vadd.f32 %v2122, %v2135
        %v2162 = vadd.f32 %v2123, %v2135
        %v2163 = vadd.f32 %v2124, %v2135
        %v2164 = vadd.f32 %v2125, %v2135
        %v2165 = vadd.f32 %v2126, %v2135
        %v2166 = vadd.f32 %v2127, %v2135
        %v2167 = vadd.f32 %v2128, %v2135
        %v2168 = vadd.f32 %v2129, %v2135
        %vm2169 = vcmp.ge.s32.totalorder %v358, 0
        %vm2170 = vcmp.lt.s32.totalorder %v358, 16
        %vm2171 = vmand %vm2169, %vm2170
        %v2172 = vsel %vm2171, 14, 1
        %vm2173 = vcmp.ge.s32.totalorder %v358, 16
        %vm2174 = vcmp.lt.s32.totalorder %v358, 40
        %vm2175 = vmand %vm2173, %vm2174
        %v2176 = vsel %vm2175, 13, %v2172
        %vm2177 = vcmp.ge.s32.totalorder %v358, 40
        %vm2178 = vcmp.lt.s32.totalorder %v358, 56
        %vm2179 = vmand %vm2177, %vm2178
        %v2180 = vsel %vm2179, 12, %v2176
        %v2181 = vadd.s32 %v1773, 8
        %vm2182 = vcmp.lt.s32.totalorder %v1773, %v2180
        %vm2183 = vcmp.lt.s32.totalorder %v2181, %v2180
        %v2184 = vsel %vm2182, %v2137, -1e+30
        %v2185 = vsel %vm2183, %v2138, -1e+30
        %v2186 = vsel %vm2182, %v2139, -1e+30
        %v2187 = vsel %vm2183, %v2140, -1e+30
        %v2188 = vsel %vm2182, %v2141, -1e+30
        %v2189 = vsel %vm2183, %v2142, -1e+30
        %v2190 = vsel %vm2182, %v2143, -1e+30
        %v2191 = vsel %vm2183, %v2144, -1e+30
        %v2192 = vsel %vm2182, %v2145, -1e+30
        %v2193 = vsel %vm2183, %v2146, -1e+30
        %v2194 = vsel %vm2182, %v2147, -1e+30
        %v2195 = vsel %vm2183, %v2148, -1e+30
        %v2196 = vsel %vm2182, %v2149, -1e+30
        %v2197 = vsel %vm2183, %v2150, -1e+30
        %v2198 = vsel %vm2182, %v2151, -1e+30
        %v2199 = vsel %vm2183, %v2152, -1e+30
        %v2200 = vsel %vm2182, %v2153, -1e+30
        %v2201 = vsel %vm2183, %v2154, -1e+30
        %v2202 = vsel %vm2182, %v2155, -1e+30
        %v2203 = vsel %vm2183, %v2156, -1e+30
        %v2204 = vsel %vm2182, %v2157, -1e+30
        %v2205 = vsel %vm2183, %v2158, -1e+30
        %v2206 = vsel %vm2182, %v2159, -1e+30
        %v2207 = vsel %vm2183, %v2160, -1e+30
        %v2208 = vsel %vm2182, %v2161, -1e+30
        %v2209 = vsel %vm2183, %v2162, -1e+30
        %v2210 = vsel %vm2182, %v2163, -1e+30
        %v2211 = vsel %vm2183, %v2164, -1e+30
        %v2212 = vsel %vm2182, %v2165, -1e+30
        %v2213 = vsel %vm2183, %v2166, -1e+30
        %v2214 = vsel %vm2182, %v2167, -1e+30
        %v2215 = vsel %vm2183, %v2168, -1e+30
        %v2216 = vmax.f32 %v2184, %v2185
        %v2217 = vrot.slane %v2216, 4
        %v2218 = vmax.f32 %v2216, %v2217
        %v2219 = vrot.slane %v2218, 2
        %v2220 = vmax.f32 %v2218, %v2219
        %v2221 = vrot.slane %v2220, 1
        %v2222 = vmax.f32 %v2220, %v2221
        %v2223 = vmax.f32 %v2186, %v2187
        %v2224 = vrot.slane %v2223, 4
        %v2225 = vmax.f32 %v2223, %v2224
        %v2226 = vrot.slane %v2225, 2
        %v2227 = vmax.f32 %v2225, %v2226
        %v2228 = vrot.slane %v2227, 1
        %v2229 = vmax.f32 %v2227, %v2228
        %v2230 = vmax.f32 %v2188, %v2189
        %v2231 = vrot.slane %v2230, 4
        %v2232 = vmax.f32 %v2230, %v2231
        %v2233 = vrot.slane %v2232, 2
        %v2234 = vmax.f32 %v2232, %v2233
        %v2235 = vrot.slane %v2234, 1
        %v2236 = vmax.f32 %v2234, %v2235
        %v2237 = vmax.f32 %v2190, %v2191
        %v2238 = vrot.slane %v2237, 4
        %v2239 = vmax.f32 %v2237, %v2238
        %v2240 = vrot.slane %v2239, 2
        %v2241 = vmax.f32 %v2239, %v2240
        %v2242 = vrot.slane %v2241, 1
        %v2243 = vmax.f32 %v2241, %v2242
        %v2244 = vmax.f32 %v2192, %v2193
        %v2245 = vrot.slane %v2244, 4
        %v2246 = vmax.f32 %v2244, %v2245
        %v2247 = vrot.slane %v2246, 2
        %v2248 = vmax.f32 %v2246, %v2247
        %v2249 = vrot.slane %v2248, 1
        %v2250 = vmax.f32 %v2248, %v2249
        %v2251 = vmax.f32 %v2194, %v2195
        %v2252 = vrot.slane %v2251, 4
        %v2253 = vmax.f32 %v2251, %v2252
        %v2254 = vrot.slane %v2253, 2
        %v2255 = vmax.f32 %v2253, %v2254
        %v2256 = vrot.slane %v2255, 1
        %v2257 = vmax.f32 %v2255, %v2256
        %v2258 = vmax.f32 %v2196, %v2197
        %v2259 = vrot.slane %v2258, 4
        %v2260 = vmax.f32 %v2258, %v2259
        %v2261 = vrot.slane %v2260, 2
        %v2262 = vmax.f32 %v2260, %v2261
        %v2263 = vrot.slane %v2262, 1
        %v2264 = vmax.f32 %v2262, %v2263
        %v2265 = vmax.f32 %v2198, %v2199
        %v2266 = vrot.slane %v2265, 4
        %v2267 = vmax.f32 %v2265, %v2266
        %v2268 = vrot.slane %v2267, 2
        %v2269 = vmax.f32 %v2267, %v2268
        %v2270 = vrot.slane %v2269, 1
        %v2271 = vmax.f32 %v2269, %v2270
        %v2272 = vmax.f32 %v2200, %v2201
        %v2273 = vrot.slane %v2272, 4
        %v2274 = vmax.f32 %v2272, %v2273
        %v2275 = vrot.slane %v2274, 2
        %v2276 = vmax.f32 %v2274, %v2275
        %v2277 = vrot.slane %v2276, 1
        %v2278 = vmax.f32 %v2276, %v2277
        %v2279 = vmax.f32 %v2202, %v2203
        %v2280 = vrot.slane %v2279, 4
        %v2281 = vmax.f32 %v2279, %v2280
        %v2282 = vrot.slane %v2281, 2
        %v2283 = vmax.f32 %v2281, %v2282
        %v2284 = vrot.slane %v2283, 1
        %v2285 = vmax.f32 %v2283, %v2284
        %v2286 = vmax.f32 %v2204, %v2205
        %v2287 = vrot.slane %v2286, 4
        %v2288 = vmax.f32 %v2286, %v2287
        %v2289 = vrot.slane %v2288, 2
        %v2290 = vmax.f32 %v2288, %v2289
        %v2291 = vrot.slane %v2290, 1
        %v2292 = vmax.f32 %v2290, %v2291
        %v2293 = vmax.f32 %v2206, %v2207
        %v2294 = vrot.slane %v2293, 4
        %v2295 = vmax.f32 %v2293, %v2294
        %v2296 = vrot.slane %v2295, 2
        %v2297 = vmax.f32 %v2295, %v2296
        %v2298 = vrot.slane %v2297, 1
        %v2299 = vmax.f32 %v2297, %v2298
        %v2300 = vmax.f32 %v2208, %v2209
        %v2301 = vrot.slane %v2300, 4
        %v2302 = vmax.f32 %v2300, %v2301
        %v2303 = vrot.slane %v2302, 2
        %v2304 = vmax.f32 %v2302, %v2303
        %v2305 = vrot.slane %v2304, 1
        %v2306 = vmax.f32 %v2304, %v2305
        %v2307 = vmax.f32 %v2210, %v2211
        %v2308 = vrot.slane %v2307, 4
        %v2309 = vmax.f32 %v2307, %v2308
        %v2310 = vrot.slane %v2309, 2
        %v2311 = vmax.f32 %v2309, %v2310
        %v2312 = vrot.slane %v2311, 1
        %v2313 = vmax.f32 %v2311, %v2312
        %v2314 = vmax.f32 %v2212, %v2213
        %v2315 = vrot.slane %v2314, 4
        %v2316 = vmax.f32 %v2314, %v2315
        %v2317 = vrot.slane %v2316, 2
        %v2318 = vmax.f32 %v2316, %v2317
        %v2319 = vrot.slane %v2318, 1
        %v2320 = vmax.f32 %v2318, %v2319
        %v2321 = vmax.f32 %v2214, %v2215
        %v2322 = vrot.slane %v2321, 4
        %v2323 = vmax.f32 %v2321, %v2322
        %v2324 = vrot.slane %v2323, 2
        %v2325 = vmax.f32 %v2323, %v2324
        %v2326 = vrot.slane %v2325, 1
        %v2327 = vmax.f32 %v2325, %v2326
        %v2328 = vmax.f32 %v2222, 0.0
        %v2329 = vmax.f32 %v2229, 0.0
        %v2330 = vmax.f32 %v2236, 0.0
        %v2331 = vmax.f32 %v2243, 0.0
        %v2332 = vmax.f32 %v2250, 0.0
        %v2333 = vmax.f32 %v2257, 0.0
        %v2334 = vmax.f32 %v2264, 0.0
        %v2335 = vmax.f32 %v2271, 0.0
        %v2336 = vmax.f32 %v2278, 0.0
        %v2337 = vmax.f32 %v2285, 0.0
        %v2338 = vmax.f32 %v2292, 0.0
        %v2339 = vmax.f32 %v2299, 0.0
        %v2340 = vmax.f32 %v2306, 0.0
        %v2341 = vmax.f32 %v2313, 0.0
        %v2342 = vmax.f32 %v2320, 0.0
        %v2343 = vmax.f32 %v2327, 0.0
        %v2344 = vld [vmem:[%s4] sm:$0xff]
        %v2345 = vld [vmem:[%s4 + $0x8] sm:$0xff]
        %v2346 = vld [vmem:[%s4 + $0x10] sm:$0xff]
        %v2347 = vld [vmem:[%s4 + $0x18] sm:$0xff]
        %v2348 = vld [vmem:[%s4 + $0x20] sm:$0xff]
        %v2349 = vld [vmem:[%s4 + $0x28] sm:$0xff]
        %v2350 = vld [vmem:[%s4 + $0x30] sm:$0xff]
        %v2351 = vld [vmem:[%s4 + $0x38] sm:$0xff]
        %v2352 = vld [vmem:[%s4 + $0x40] sm:$0xff]
        %v2353 = vld [vmem:[%s4 + $0x48] sm:$0xff]
        %v2354 = vld [vmem:[%s4 + $0x50] sm:$0xff]
        %v2355 = vld [vmem:[%s4 + $0x58] sm:$0xff]
        %v2356 = vld [vmem:[%s4 + $0x60] sm:$0xff]
        %v2357 = vld [vmem:[%s4 + $0x68] sm:$0xff]
        %v2358 = vld [vmem:[%s4 + $0x70] sm:$0xff]
        %v2359 = vld [vmem:[%s4 + $0x78] sm:$0xff]
        %v2360 = vld [vmem:[%s4 + $0x80] sm:$0xff]
        %v2361 = vld [vmem:[%s4 + $0x88] sm:$0xff]
        %v2362 = vld [vmem:[%s4 + $0x90] sm:$0xff]
        %v2363 = vld [vmem:[%s4 + $0x98] sm:$0xff]
        %v2364 = vld [vmem:[%s4 + $0xa0] sm:$0xff]
        %v2365 = vld [vmem:[%s4 + $0xa8] sm:$0xff]
        %v2366 = vld [vmem:[%s4 + $0xb0] sm:$0xff]
        %v2367 = vld [vmem:[%s4 + $0xb8] sm:$0xff]
        %v2368 = vld [vmem:[%s4 + $0xc0] sm:$0xff]
        %v2369 = vld [vmem:[%s4 + $0xc8] sm:$0xff]
        %v2370 = vld [vmem:[%s4 + $0xd0] sm:$0xff]
        %v2371 = vld [vmem:[%s4 + $0xd8] sm:$0xff]
        %v2372 = vld [vmem:[%s4 + $0xe0] sm:$0xff]
        %v2373 = vld [vmem:[%s4 + $0xe8] sm:$0xff]
        %v2374 = vld [vmem:[%s4 + $0xf0] sm:$0xff]
        %v2375 = vld [vmem:[%s4 + $0xf8] sm:$0xff]
        %v2376 = vld [vmem:[%s5] sm:$0x3]
        %v2378 = vlaneseq
        %v2379 = vshrl.u32 %v2378, 7
        %v2380 = vsub.s32 0, %v2379
        %v2381 = vrot.slane %v2376, %v2380
        %v2382 = vlaneseq
        %v2383 = vshrl.u32 %v2382, 7
        %v2384 = vsub.s32 1, %v2383
        %v2385 = vrot.slane %v2376, %v2384
        %vm2404 = vcmask 1041409
        %v2405 = vsel %vm2404, %v2329, %v2328
        %vm2406 = vcmask 1042434
        %v2407 = vsel %vm2406, %v2330, %v2405
        %vm2408 = vcmask 1043459
        %v2409 = vsel %vm2408, %v2331, %v2407
        %vm2410 = vcmask 1044484
        %v2411 = vsel %vm2410, %v2332, %v2409
        %vm2412 = vcmask 1045509
        %v2413 = vsel %vm2412, %v2333, %v2411
        %vm2414 = vcmask 1046534
        %v2415 = vsel %vm2414, %v2334, %v2413
        %vm2416 = vcmask 1047559
        %v2417 = vsel %vm2416, %v2335, %v2415
        %v2418 = vsel %vm2404, %v2337, %v2336
        %v2419 = vsel %vm2406, %v2338, %v2418
        %v2420 = vsel %vm2408, %v2339, %v2419
        %v2421 = vsel %vm2410, %v2340, %v2420
        %v2422 = vsel %vm2412, %v2341, %v2421
        %v2423 = vsel %vm2414, %v2342, %v2422
        %v2424 = vsel %vm2416, %v2343, %v2423
        %2427 = vmatprep.subr.mxu0 %v2345
        %2428 = vmatpush1.msra.mxu0 %v2344
        %2429 = vmatprep.subr.mxu0 %v2347
        %2430 = vmatpush1.msra.mxu0 %v2346
        %2431 = vmatprep.subr.mxu0 %v2349
        %2432 = vmatpush1.msra.mxu0 %v2348
        %2433 = vmatprep.subr.mxu0 %v2351
        %2434 = vmatpush1.msra.mxu0 %v2350
        %2435 = vmatprep.subr.mxu0 %v2353
        %2436 = vmatpush1.msra.mxu0 %v2352
        %2437 = vmatprep.subr.mxu0 %v2355
        %2438 = vmatpush1.msra.mxu0 %v2354
        %2439 = vmatprep.subr.mxu0 %v2357
        %2440 = vmatpush1.msra.mxu0 %v2356
        %2441 = vmatprep.subr.mxu0 %v2359
        %2442 = vmatpush1.msra.mxu0 %v2358
        %2443 = vmatprep.subr.mxu0 %v2361
        %2444 = vmatpush1.msra.mxu0 %v2360
        %2445 = vmatprep.subr.mxu0 %v2363
        %2446 = vmatpush1.msra.mxu0 %v2362
        %2447 = vmatprep.subr.mxu0 %v2365
        %2448 = vmatpush1.msra.mxu0 %v2364
        %2449 = vmatprep.subr.mxu0 %v2367
        %2450 = vmatpush1.msra.mxu0 %v2366
        %2451 = vmatprep.subr.mxu0 %v2369
        %2452 = vmatpush1.msra.mxu0 %v2368
        %2453 = vmatprep.subr.mxu0 %v2371
        %2454 = vmatpush1.msra.mxu0 %v2370
        %2455 = vmatprep.subr.mxu0 %v2373
        %2456 = vmatpush1.msra.mxu0 %v2372
        %2457 = vmatprep.subr.mxu0 %v2375
        %2458 = vmatpush1.msra.mxu0 %v2374
        %2459 = vmatprep.subr.mxu0 0.0
        %2460 = vmatpush1.msra.mxu0 0.0
        %2461 = vmatprep.subr.mxu0 0.0
        %2462 = vmatpush1.msra.mxu0 0.0
        %2463 = vmatprep.subr.mxu0 0.0
        %2464 = vmatpush1.msra.mxu0 0.0
        %2465 = vmatprep.subr.mxu0 0.0
        %2466 = vmatpush1.msra.mxu0 0.0
        %2467 = vmatprep.subr.mxu0 0.0
        %2468 = vmatpush1.msra.mxu0 0.0
        %2469 = vmatprep.subr.mxu0 0.0
        %2470 = vmatpush1.msra.mxu0 0.0
        %2471 = vmatprep.subr.mxu0 0.0
        %2472 = vmatpush1.msra.mxu0 0.0
        %2473 = vmatprep.subr.mxu0 0.0
        %2474 = vmatpush1.msra.mxu0 0.0
        %2475 = vmatprep.subr.mxu0 0.0
        %2476 = vmatpush1.msra.mxu0 0.0
        %2477 = vmatprep.subr.mxu0 0.0
        %2478 = vmatpush1.msra.mxu0 0.0
        %2479 = vmatprep.subr.mxu0 0.0
        %2480 = vmatpush1.msra.mxu0 0.0
        %2481 = vmatprep.subr.mxu0 0.0
        %2482 = vmatpush1.msra.mxu0 0.0
        %2483 = vmatprep.subr.mxu0 0.0
        %2484 = vmatpush1.msra.mxu0 0.0
        %2485 = vmatprep.subr.mxu0 0.0
        %2486 = vmatpush1.msra.mxu0 0.0
        %2487 = vmatprep.subr.mxu0 0.0
        %2488 = vmatpush1.msra.mxu0 0.0
        %2489 = vmatprep.subr.mxu0 0.0
        %2490 = vmatpush1.msra.mxu0 0.0
        %2491 = vmatprep.mubr.f32.mxu0 0.0
        %2492 = vmatmul.mubr.f32.gmra.mrb[0].mxu0 %v2417
        %v2493 = vpop.f32.mrb[0].mxu0
        %v2494 = vadd.f32 %v2381, %v2493
        %v2495 = vpop.f32.mrb[0].mxu0
        %v2496 = vadd.f32 %v2385, %v2495
        %2497 = vmatprep.mubr.f32.mxu0 0.0
        %2498 = vmatmul.mubr.f32.gmra.mrb[0].mxu0 %v2424
        %v2499 = vpop.f32.mrb[0].mxu0
        %v2500 = vadd.f32 %v2381, %v2499
        %v2501 = vpop.f32.mrb[0].mxu0
        %v2502 = vadd.f32 %v2385, %v2501
        %2503 = vdwg.mxu0
        %v2504 = vmax.f32 %v2494, 0.0
        %v2505 = vmax.f32 %v2496, 0.0
        %v2506 = vmax.f32 %v2500, 0.0
        %v2507 = vmax.f32 %v2502, 0.0
        %v2508 = vld [vmem:[%s6] sm:$0xff]
        %v2509 = vld [vmem:[%s6 + $0x8] sm:$0xff]
        %v2510 = vld [vmem:[%s6 + $0x10] sm:$0xff]
        %v2511 = vld [vmem:[%s6 + $0x18] sm:$0xff]
        %v2512 = vld [vmem:[%s6 + $0x20] sm:$0xff]
        %v2513 = vld [vmem:[%s6 + $0x28] sm:$0xff]
        %v2514 = vld [vmem:[%s6 + $0x30] sm:$0xff]
        %v2515 = vld [vmem:[%s6 + $0x38] sm:$0xff]
        %v2516 = vld [vmem:[%s6 + $0x40] sm:$0xff]
        %v2517 = vld [vmem:[%s6 + $0x48] sm:$0xff]
        %v2518 = vld [vmem:[%s6 + $0x50] sm:$0xff]
        %v2519 = vld [vmem:[%s6 + $0x58] sm:$0xff]
        %v2520 = vld [vmem:[%s6 + $0x60] sm:$0xff]
        %v2521 = vld [vmem:[%s6 + $0x68] sm:$0xff]
        %v2522 = vld [vmem:[%s6 + $0x70] sm:$0xff]
        %v2523 = vld [vmem:[%s6 + $0x78] sm:$0xff]
        %v2524 = vld [vmem:[%s6 + $0x80] sm:$0xff]
        %v2525 = vld [vmem:[%s6 + $0x88] sm:$0xff]
        %v2526 = vld [vmem:[%s6 + $0x90] sm:$0xff]
        %v2527 = vld [vmem:[%s6 + $0x98] sm:$0xff]
        %v2528 = vld [vmem:[%s6 + $0xa0] sm:$0xff]
        %v2529 = vld [vmem:[%s6 + $0xa8] sm:$0xff]
        %v2530 = vld [vmem:[%s6 + $0xb0] sm:$0xff]
        %v2531 = vld [vmem:[%s6 + $0xb8] sm:$0xff]
        %v2532 = vld [vmem:[%s6 + $0xc0] sm:$0xff]
        %v2533 = vld [vmem:[%s6 + $0xc8] sm:$0xff]
        %v2534 = vld [vmem:[%s6 + $0xd0] sm:$0xff]
        %v2535 = vld [vmem:[%s6 + $0xd8] sm:$0xff]
        %v2536 = vld [vmem:[%s6 + $0xe0] sm:$0xff]
        %v2537 = vld [vmem:[%s6 + $0xe8] sm:$0xff]
        %v2538 = vld [vmem:[%s6 + $0xf0] sm:$0xff]
        %v2539 = vld [vmem:[%s6 + $0xf8] sm:$0xff]
        %v2540 = vld [vmem:[%s7] sm:$0x1]
        %v2542 = vlaneseq
        %v2543 = vshrl.u32 %v2542, 7
        %v2544 = vsub.s32 0, %v2543
        %v2545 = vrot.slane %v2540, %v2544
        %2547 = vmatprep.subr.mxu0 0.0
        %2548 = vmatpush1.msra.mxu0 %v2508
        %2549 = vmatprep.subr.mxu0 0.0
        %2550 = vmatpush1.msra.mxu0 %v2509
        %2551 = vmatprep.subr.mxu0 0.0
        %2552 = vmatpush1.msra.mxu0 %v2510
        %2553 = vmatprep.subr.mxu0 0.0
        %2554 = vmatpush1.msra.mxu0 %v2511
        %2555 = vmatprep.subr.mxu0 0.0
        %2556 = vmatpush1.msra.mxu0 %v2512
        %2557 = vmatprep.subr.mxu0 0.0
        %2558 = vmatpush1.msra.mxu0 %v2513
        %2559 = vmatprep.subr.mxu0 0.0
        %2560 = vmatpush1.msra.mxu0 %v2514
        %2561 = vmatprep.subr.mxu0 0.0
        %2562 = vmatpush1.msra.mxu0 %v2515
        %2563 = vmatprep.subr.mxu0 0.0
        %2564 = vmatpush1.msra.mxu0 %v2516
        %2565 = vmatprep.subr.mxu0 0.0
        %2566 = vmatpush1.msra.mxu0 %v2517
        %2567 = vmatprep.subr.mxu0 0.0
        %2568 = vmatpush1.msra.mxu0 %v2518
        %2569 = vmatprep.subr.mxu0 0.0
        %2570 = vmatpush1.msra.mxu0 %v2519
        %2571 = vmatprep.subr.mxu0 0.0
        %2572 = vmatpush1.msra.mxu0 %v2520
        %2573 = vmatprep.subr.mxu0 0.0
        %2574 = vmatpush1.msra.mxu0 %v2521
        %2575 = vmatprep.subr.mxu0 0.0
        %2576 = vmatpush1.msra.mxu0 %v2522
        %2577 = vmatprep.subr.mxu0 0.0
        %2578 = vmatpush1.msra.mxu0 %v2523
        %2579 = vmatprep.subr.mxu0 0.0
        %2580 = vmatpush1.msra.mxu0 %v2524
        %2581 = vmatprep.subr.mxu0 0.0
        %2582 = vmatpush1.msra.mxu0 %v2525
        %2583 = vmatprep.subr.mxu0 0.0
        %2584 = vmatpush1.msra.mxu0 %v2526
        %2585 = vmatprep.subr.mxu0 0.0
        %2586 = vmatpush1.msra.mxu0 %v2527
        %2587 = vmatprep.subr.mxu0 0.0
        %2588 = vmatpush1.msra.mxu0 %v2528
        %2589 = vmatprep.subr.mxu0 0.0
        %2590 = vmatpush1.msra.mxu0 %v2529
        %2591 = vmatprep.subr.mxu0 0.0
        %2592 = vmatpush1.msra.mxu0 %v2530
        %2593 = vmatprep.subr.mxu0 0.0
        %2594 = vmatpush1.msra.mxu0 %v2531
        %2595 = vmatprep.subr.mxu0 0.0
        %2596 = vmatpush1.msra.mxu0 %v2532
        %2597 = vmatprep.subr.mxu0 0.0
        %2598 = vmatpush1.msra.mxu0 %v2533
        %2599 = vmatprep.subr.mxu0 0.0
        %2600 = vmatpush1.msra.mxu0 %v2534
        %2601 = vmatprep.subr.mxu0 0.0
        %2602 = vmatpush1.msra.mxu0 %v2535
        %2603 = vmatprep.subr.mxu0 0.0
        %2604 = vmatpush1.msra.mxu0 %v2536
        %2605 = vmatprep.subr.mxu0 0.0
        %2606 = vmatpush1.msra.mxu0 %v2537
        %2607 = vmatprep.subr.mxu0 0.0
        %2608 = vmatpush1.msra.mxu0 %v2538
        %2609 = vmatprep.subr.mxu0 0.0
        %2610 = vmatpush1.msra.mxu0 %v2539
        %2611 = vmatprep.mubr.f32.mxu0 %v2505
        %2612 = vmatmul.mubr.f32.gmra.mrb[0].mxu0 %v2504
        %v2613 = vpop.f32.mrb[0].mxu0
        %v2614 = vadd.f32 %v2545, %v2613
        %v2615 = vpop.f32.mrb[0].mxu0
        %2616 = vmatprep.mubr.f32.mxu0 %v2507
        %2617 = vmatmul.mubr.f32.gmra.mrb[0].mxu0 %v2506
        %v2618 = vpop.f32.mrb[0].mxu0
        %v2619 = vadd.f32 %v2545, %v2618
        %v2620 = vpop.f32.mrb[0].mxu0
        %2621 = vdwg.mxu0
        %2622 = vst [vmem:[%s316] sm:$0xff] %v2614
        %2623 = vst [vmem:[%s316 + $0x8] sm:$0xff] %v2619
        %s2624 = sand.u32 %s204, 1
        %s2625 = scalar_lea.sflag [#allocation4], %s2624
        %s2626 = sand.u32 %s204, 1
        %s2627 = smul.addr %s2626, 16
        %s2628 = scalar_lea.vmem [#allocation5], %s2627
        // Predicated region
        $region57: #{tpu_custom_call.1} parent=51 // pred_check
          %p2629 = pneg %p214
        $region58: #{tpu_custom_call.1} parent=51 // pred_check_branch
          %2631 = sbr.rel (%p2629) target = $region60
        $region59: #{tpu_custom_call.1} parent=51 // pred_region
          %s2632 = smul.u32 2, %s23
          %s2634 = ssub.s32 256, 256
          %2635 = vsyncadd %s2625, %s2634
          %s2636 = smul.addr %s2632, 128
          %s2637 = scalar_lea.hbm %s8, %s2636
          %s2638 = sshll.u32 %s2628, 4
          %s2639 = int_to_ptr.vmem [resolvable:$true] %s2638
          %2644 = dma.vmem_to_hbm [thread:$0]  %s2639, 256, %s2637, %s2625, 128, 128, 8
        $region60: #{tpu_custom_call.1} parent=51 // pred_fallthru
          _
      $region52: #{tpu_custom_call.1} parent=5 // pred_fallthru
        _
      %p2645 = scmp.le.s32.totalorder 2, %s18
      // Predicated region
      $region61: #{tpu_custom_call.1} parent=5 // pred_check
        %p2646 = pneg %p2645
      $region62: #{tpu_custom_call.1} parent=5 // pred_check_branch
        %2648 = sbr.rel (%p2646) target = $region64
      $region63: #{tpu_custom_call.1} parent=5 // pred_region
        %s2649 = ssub.s32 %s18, 2
        // Predicated region
        $region65: #{tpu_custom_call.1} parent=63 // pred_check
          %p2650 = pneg %p220
        $region66: #{tpu_custom_call.1} parent=63 // pred_check_branch
          %2652 = sbr.rel (%p2650) target = $region68
        $region67: #{tpu_custom_call.1} parent=63 // pred_region
          %s2653 = sand.u32 %s205, 1
          %s2654 = scalar_lea.sflag [#allocation4], %s2653
          %s2655 = sand.u32 %s205, 1
          %s2656 = smul.addr %s2655, 16
          %s2657 = scalar_lea.vmem [#allocation5], %s2656
          %2658 = dma.done %s2654, 256
        $region68: #{tpu_custom_call.1} parent=63 // pred_fallthru
          _
      $region64: #{tpu_custom_call.1} parent=5 // pred_fallthru
        _
    $region6: #{tpu_custom_call.1} parent=1 // loop_footer
      %s22 = sadd.s32 1, %s18
    $region7: #{tpu_custom_call.1} parent=1 // loop_footer_branch
      %17 = sbr.rel target = $region3
    $region8: #{tpu_custom_call.1} parent=1 // loop_exit
      _
    %2659 = vsyncpa [#allocation3], 1
    %s2660 = scalar_lea.sflag [#allocation3], 1
    %2661 = vsyncpa %s2660, 1
    %2662 = vsyncpa [#allocation4], 1
    %s2663 = scalar_lea.sflag [#allocation4], 1
    %2664 = vsyncpa %s2663, 1

</llo_original>
